<compile_context>
chip_gen: v7x
topology: tpu7x:2x2x1
jax: 0.10.0
libtpu: 0.0.40
codegen_flags: <defaults>
</compile_context>

<pallas_src>
import functools

import jax
import jax.numpy as jnp
from jax.experimental import pallas as pl
from jax.experimental.pallas import tpu as pltpu

N_GROUPS = 16                 # number of separate Linear layers
IN_DIM = 6                    # nn.Linear in_features
OUT_DIM = 16                  # nn.Linear out_features
FOLD = 4                      # rows folded per matmul row (4*96 = 384 = 3*128 lanes)
ROW_IN = FOLD * 6 * IN_DIM    # 144 : folded input lane width
ROW_OUT = FOLD * 6 * OUT_DIM  # 384 : folded output lane width (unmasked vst)
TM_MAX = 2048                 # folded rows / step (~4.2 MiB HBM in+out traffic,
                              #  ~10.5 MiB padded+double-buffered VMEM at gb=1)
GB_MAX = 4                    # groups packed per step (divides 16; bounds live ranges,
                              #  keeps grid >= (4,1) so both v7x TCs get work)


def _cdiv(a, b):
    return -(-a // b)


def _sep_linear_kernel(x_ref, w_ref, b_ref, o_ref):
    # x_ref: (GB, TM, 144)   folded rows of GB groups for this tile
    # w_ref: (GB, 144, 384)  block-diagonal weight per group (VMEM-resident across M tiles)
    # b_ref: (GB, 1, 384)    24x-tiled bias per group
    # o_ref: (GB, TM, 384)
    gb = x_ref.shape[0]
    if gb == 1:
        acc = jnp.dot(x_ref[0], w_ref[0], preferred_element_type=jnp.float32)
        o_ref[0] = (acc + b_ref[0]).astype(o_ref.dtype)
    else:
        # Bounded loop over packed groups: each iteration retires its (TM, 384)
        # tile to o_ref before the next starts (gb <= GB_MAX = 4).
        def body(g, carry):
            acc = jnp.dot(x_ref[g], w_ref[g], preferred_element_type=jnp.float32)
            o_ref[g] = (acc + b_ref[g]).astype(o_ref.dtype)
            return carry

        jax.lax.fori_loop(0, gb, body, 0, unroll=True)


def prepare_separate_linear_params(weights, biases, dtype=jnp.float32):
    """One-time parameter prep (hoisted out of the per-forward hot path).

    weights: (16, OUT_DIM, IN_DIM)  -- PyTorch nn.Linear weight layout (out, in)
    biases:  (16, OUT_DIM)
    returns: w_bd (16, 144, 384) block-diagonal weight, b_tiled (16, 1, 384)
    """
    n_blocks = FOLD * 6                                     # 24 diagonal (6,16) blocks
    w_t = jnp.transpose(weights, (0, 2, 1)).astype(dtype)   # (16, 6, 16)
    eye = jnp.eye(n_blocks, dtype=dtype)
    w_bd = jnp.einsum("rs,gio->griso", eye, w_t).reshape(N_GROUPS, ROW_IN, ROW_OUT)
    b_tiled = jnp.tile(biases.astype(dtype)[:, None, :], (1, 1, n_blocks)).reshape(
        N_GROUPS, 1, ROW_OUT)
    return w_bd, b_tiled


def _select_tiles(rows4, tm_max):
    """Pick (groups-per-step gb, folded rows-per-step tm)."""
    if rows4 <= tm_max:
        tm = rows4                                  # one row tile = all rows of a group
        gb = min(GB_MAX, max(1, tm_max // rows4))   # pack groups for tiny batches
        while N_GROUPS % gb:                        # gb must divide 16 -> 1, 2 or 4
            gb -= 1
    else:
        gb = 1
        tm = tm_max
        # Prefer a row tile that evenly divides rows4 (no padded last tile); only
        # accept candidates within 2x of TM_MAX so tm never degrades to a sliver.
        lo = _cdiv(rows4, tm_max)
        for n_tiles in range(lo, 2 * lo + 1):
            cand = rows4 // n_tiles
            if rows4 % n_tiles == 0 and cand % 8 == 0:
                tm = cand
                break
    return gb, tm


@functools.partial(jax.jit, static_argnames=("tm_max",))
def separate_linear(x, w_bd, b_tiled, *, tm_max=TM_MAX):
    """Pallas implementation of SeparateLinear.forward (hot path).

    x:       (bs, 16*32*6*6) float32
    w_bd:    (16, 144, 384)  from prepare_separate_linear_params
    b_tiled: (16, 1, 384)    from prepare_separate_linear_params
    returns: (bs, 16, 32, 6, 16)
    """
    bs = x.shape[0]
    rows = bs * 32              # 36-wide rows per group (always a multiple of FOLD)
    assert rows % FOLD == 0
    rows4 = rows // FOLD        # folded 144-wide rows per group

    # Flat reshape identical to torch's x.reshape((16, bs, 32, 6, 6)); the trailing
    # (6, 6) plus FOLD consecutive rows are folded into one 144-wide lane dimension
    # (pure byte reinterpretation, no transpose).
    x2 = jnp.reshape(x, (N_GROUPS, rows4, ROW_IN))

    gb, tm = _select_tiles(rows4, tm_max)
    grid = (N_GROUPS // gb, _cdiv(rows4, tm))

    # Real per-step VMEM footprint: lane-padded blocks, double-buffered by the pipeline.
    lane = lambda n: _cdiv(n, 128) * 128
    blk_bytes = 4 * gb * (tm * lane(ROW_IN) + tm * ROW_OUT
                          + ROW_IN * ROW_OUT + 8 * ROW_OUT)
    vmem_limit = int(min(32 << 20, max(2 * blk_bytes + (4 << 20), 16 << 20)))

    flops = 2 * N_GROUPS * rows4 * ROW_IN * ROW_OUT
    bytes_accessed = 4 * (N_GROUPS * rows4 * (ROW_IN + ROW_OUT)
                          + N_GROUPS * (ROW_IN * ROW_OUT + ROW_OUT))

    y = pl.pallas_call(
        _sep_linear_kernel,
        out_shape=jax.ShapeDtypeStruct((N_GROUPS, rows4, ROW_OUT), x.dtype),
        grid_spec=pltpu.PrefetchScalarGridSpec(
            num_scalar_prefetch=0,
            grid=grid,  # (group-block axis, row-tile axis); row tiles iterate fastest
            in_specs=[
                pl.BlockSpec((gb, tm, ROW_IN), lambda g, m: (g, m, 0)),
                # weights / bias: index_map ignores the row-tile axis -> no re-DMA per tile
                pl.BlockSpec((gb, ROW_IN, ROW_OUT), lambda g, m: (g, 0, 0)),
                pl.BlockSpec((gb, 1, ROW_OUT), lambda g, m: (g, 0, 0)),
            ],
            out_specs=pl.BlockSpec((gb, tm, ROW_OUT), lambda g, m: (g, m, 0)),
        ),
        compiler_params=pltpu.CompilerParams(
            dimension_semantics=("parallel", "parallel"),
            vmem_limit_bytes=vmem_limit,
        ),
        cost_estimate=pl.CostEstimate(
            flops=flops, transcendentals=0, bytes_accessed=bytes_accessed),
    )(x2, w_bd, b_tiled)

    # torch.stack(outs) -> (16, bs, 32, 6, 16), then flat .reshape(bs, 16, 32, 6, 16);
    # both are flat reinterpretations, so a single flat reshape reproduces them.
    return jnp.reshape(y, (bs, N_GROUPS, 32, 6, OUT_DIM))


def _reference(x, weights, biases):
    bs = x.shape[0]
    xg = jnp.reshape(x, (N_GROUPS, bs, 32, 6, IN_DIM))
    y = jnp.einsum("gbhwk,gok->gbhwo", xg, weights) + biases[:, None, None, None, :]
    return jnp.reshape(y, (bs, N_GROUPS, 32, 6, OUT_DIM))


if __name__ == "__main__":
    key = jax.random.PRNGKey(0)
    kx, kw, kb = jax.random.split(key, 3)

    bs = 2
    x = jax.random.normal(kx, (bs, N_GROUPS * 32 * 6 * IN_DIM), dtype=jnp.float32)
    # Deterministic parameter init (synthetic; shapes match nn.Linear(6, 16) x16).
    bound = 1.0 / (IN_DIM ** 0.5)
    weights = jax.random.uniform(
        kw, (N_GROUPS, OUT_DIM, IN_DIM), minval=-bound, maxval=bound, dtype=jnp.float32
    )
    biases = jax.random.uniform(
        kb, (N_GROUPS, OUT_DIM), minval=-bound, maxval=bound, dtype=jnp.float32
    )

    # One-time parameter prep (outside the forward hot path).
    w_bd, b_tiled = prepare_separate_linear_params(weights, biases)
    w_bd, b_tiled = jax.block_until_ready((w_bd, b_tiled))

    out = separate_linear(x, w_bd, b_tiled)
    out = jax.block_until_ready(out)

    ref = _reference(x, weights, biases)
    assert out.shape == (bs, N_GROUPS, 32, 6, OUT_DIM), out.shape
    assert jnp.allclose(out, ref, atol=1e-5, rtol=1e-5), "mismatch vs reference"

    print("KERNEL_OK")
</pallas_src>

<mosaic_0001>
module attributes {stable_mosaic.version = 11 : i64} {
  func.func @_sep_linear_kernel(%arg0: i32, %arg1: i32, %arg2: memref<4x16x144xf32, #tpu.memory_space<vmem>>, %arg3: memref<4x144x384xf32, #tpu.memory_space<vmem>>, %arg4: memref<4x1x384xf32, #tpu.memory_space<vmem>>, %arg5: memref<4x16x384xf32, #tpu.memory_space<vmem>>) attributes {dimension_semantics = [#tpu.dimension_semantics<parallel>, #tpu.dimension_semantics<parallel>], iteration_bounds = array<i64: 4, 1>, scalar_prefetch = 0 : i64, scratch_operands = 0 : i64, tpu.core_type = #tpu.core_type<tc>, window_params = [{transform_indices = @transform_0, window_bounds = array<i64: 4, 16, 144>}, {transform_indices = @transform_1, window_bounds = array<i64: 4, 144, 384>}, {transform_indices = @transform_2, window_bounds = array<i64: 4, 1, 384>}, {transform_indices = @transform_3, window_bounds = array<i64: 4, 16, 384>}]} {
    %c0_i32 = arith.constant 0 : i32
    %0 = arith.index_cast %c0_i32 : i32 to index
    %c0 = arith.constant 0 : index
    %c0_0 = arith.constant 0 : index
    %1 = vector.load %arg2[%0, %c0, %c0_0] : memref<4x16x144xf32, #tpu.memory_space<vmem>>, vector<1x16x144xf32>
    %2 = vector.shape_cast %1 : vector<1x16x144xf32> to vector<16x144xf32>
    %3 = arith.index_cast %c0_i32 : i32 to index
    %c0_1 = arith.constant 0 : index
    %c0_2 = arith.constant 0 : index
    %4 = vector.load %arg3[%3, %c0_1, %c0_2] : memref<4x144x384xf32, #tpu.memory_space<vmem>>, vector<1x144x384xf32>
    %5 = vector.shape_cast %4 : vector<1x144x384xf32> to vector<144x384xf32>
    %cst = arith.constant dense<0.000000e+00> : vector<16x384xf32>
    %6 = tpu.matmul %2, %5, %cst {dimension_numbers = #tpu.dot_dimension_numbers<[1], [0], [0], [1], [0, 0, 1, 1], [], []>} : vector<16x144xf32>, vector<144x384xf32>, vector<16x384xf32> -> vector<16x384xf32>
    %7 = arith.index_cast %c0_i32 : i32 to index
    %c0_3 = arith.constant 0 : index
    %c0_4 = arith.constant 0 : index
    %8 = vector.load %arg4[%7, %c0_3, %c0_4] : memref<4x1x384xf32, #tpu.memory_space<vmem>>, vector<1x1x384xf32>
    %9 = vector.shape_cast %8 : vector<1x1x384xf32> to vector<1x384xf32>
    %10 = vector.broadcast %9 : vector<1x384xf32> to vector<16x384xf32>
    %11 = arith.addf %6, %10 : vector<16x384xf32>
    %12 = arith.index_cast %c0_i32 : i32 to index
    %c0_5 = arith.constant 0 : index
    %c0_6 = arith.constant 0 : index
    %13 = vector.load %arg5[%12, %c0_5, %c0_6] : memref<4x16x384xf32, #tpu.memory_space<vmem>>, vector<1x16x384xf32>
    %14 = vector.shape_cast %13 : vector<1x16x384xf32> to vector<16x384xf32>
    %15 = vector.shape_cast %11 : vector<16x384xf32> to vector<1x16x384xf32>
    tpu.vector_store %arg5[%12, %c0_5, %c0_6], %15 {strides = array<i32>} : memref<4x16x384xf32, #tpu.memory_space<vmem>>, vector<1x16x384xf32>,
    %c1_i32 = arith.constant 1 : i32
    %16 = arith.index_cast %c1_i32 : i32 to index
    %c0_7 = arith.constant 0 : index
    %c0_8 = arith.constant 0 : index
    %17 = vector.load %arg2[%16, %c0_7, %c0_8] : memref<4x16x144xf32, #tpu.memory_space<vmem>>, vector<1x16x144xf32>
    %18 = vector.shape_cast %17 : vector<1x16x144xf32> to vector<16x144xf32>
    %19 = arith.index_cast %c1_i32 : i32 to index
    %c0_9 = arith.constant 0 : index
    %c0_10 = arith.constant 0 : index
    %20 = vector.load %arg3[%19, %c0_9, %c0_10] : memref<4x144x384xf32, #tpu.memory_space<vmem>>, vector<1x144x384xf32>
    %21 = vector.shape_cast %20 : vector<1x144x384xf32> to vector<144x384xf32>
    %cst_11 = arith.constant dense<0.000000e+00> : vector<16x384xf32>
    %22 = tpu.matmul %18, %21, %cst_11 {dimension_numbers = #tpu.dot_dimension_numbers<[1], [0], [0], [1], [0, 0, 1, 1], [], []>} : vector<16x144xf32>, vector<144x384xf32>, vector<16x384xf32> -> vector<16x384xf32>
    %23 = arith.index_cast %c1_i32 : i32 to index
    %c0_12 = arith.constant 0 : index
    %c0_13 = arith.constant 0 : index
    %24 = vector.load %arg4[%23, %c0_12, %c0_13] : memref<4x1x384xf32, #tpu.memory_space<vmem>>, vector<1x1x384xf32>
    %25 = vector.shape_cast %24 : vector<1x1x384xf32> to vector<1x384xf32>
    %26 = vector.broadcast %25 : vector<1x384xf32> to vector<16x384xf32>
    %27 = arith.addf %22, %26 : vector<16x384xf32>
    %28 = arith.index_cast %c1_i32 : i32 to index
    %c0_14 = arith.constant 0 : index
    %c0_15 = arith.constant 0 : index
    %29 = vector.load %arg5[%28, %c0_14, %c0_15] : memref<4x16x384xf32, #tpu.memory_space<vmem>>, vector<1x16x384xf32>
    %30 = vector.shape_cast %29 : vector<1x16x384xf32> to vector<16x384xf32>
    %31 = vector.shape_cast %27 : vector<16x384xf32> to vector<1x16x384xf32>
    tpu.vector_store %arg5[%28, %c0_14, %c0_15], %31 {strides = array<i32>} : memref<4x16x384xf32, #tpu.memory_space<vmem>>, vector<1x16x384xf32>,
    %c2_i32 = arith.constant 2 : i32
    %32 = arith.index_cast %c2_i32 : i32 to index
    %c0_16 = arith.constant 0 : index
    %c0_17 = arith.constant 0 : index
    %33 = vector.load %arg2[%32, %c0_16, %c0_17] : memref<4x16x144xf32, #tpu.memory_space<vmem>>, vector<1x16x144xf32>
    %34 = vector.shape_cast %33 : vector<1x16x144xf32> to vector<16x144xf32>
    %35 = arith.index_cast %c2_i32 : i32 to index
    %c0_18 = arith.constant 0 : index
    %c0_19 = arith.constant 0 : index
    %36 = vector.load %arg3[%35, %c0_18, %c0_19] : memref<4x144x384xf32, #tpu.memory_space<vmem>>, vector<1x144x384xf32>
    %37 = vector.shape_cast %36 : vector<1x144x384xf32> to vector<144x384xf32>
    %cst_20 = arith.constant dense<0.000000e+00> : vector<16x384xf32>
    %38 = tpu.matmul %34, %37, %cst_20 {dimension_numbers = #tpu.dot_dimension_numbers<[1], [0], [0], [1], [0, 0, 1, 1], [], []>} : vector<16x144xf32>, vector<144x384xf32>, vector<16x384xf32> -> vector<16x384xf32>
    %39 = arith.index_cast %c2_i32 : i32 to index
    %c0_21 = arith.constant 0 : index
    %c0_22 = arith.constant 0 : index
    %40 = vector.load %arg4[%39, %c0_21, %c0_22] : memref<4x1x384xf32, #tpu.memory_space<vmem>>, vector<1x1x384xf32>
    %41 = vector.shape_cast %40 : vector<1x1x384xf32> to vector<1x384xf32>
    %42 = vector.broadcast %41 : vector<1x384xf32> to vector<16x384xf32>
    %43 = arith.addf %38, %42 : vector<16x384xf32>
    %44 = arith.index_cast %c2_i32 : i32 to index
    %c0_23 = arith.constant 0 : index
    %c0_24 = arith.constant 0 : index
    %45 = vector.load %arg5[%44, %c0_23, %c0_24] : memref<4x16x384xf32, #tpu.memory_space<vmem>>, vector<1x16x384xf32>
    %46 = vector.shape_cast %45 : vector<1x16x384xf32> to vector<16x384xf32>
    %47 = vector.shape_cast %43 : vector<16x384xf32> to vector<1x16x384xf32>
    tpu.vector_store %arg5[%44, %c0_23, %c0_24], %47 {strides = array<i32>} : memref<4x16x384xf32, #tpu.memory_space<vmem>>, vector<1x16x384xf32>,
    %c3_i32 = arith.constant 3 : i32
    %48 = arith.index_cast %c3_i32 : i32 to index
    %c0_25 = arith.constant 0 : index
    %c0_26 = arith.constant 0 : index
    %49 = vector.load %arg2[%48, %c0_25, %c0_26] : memref<4x16x144xf32, #tpu.memory_space<vmem>>, vector<1x16x144xf32>
    %50 = vector.shape_cast %49 : vector<1x16x144xf32> to vector<16x144xf32>
    %51 = arith.index_cast %c3_i32 : i32 to index
    %c0_27 = arith.constant 0 : index
    %c0_28 = arith.constant 0 : index
    %52 = vector.load %arg3[%51, %c0_27, %c0_28] : memref<4x144x384xf32, #tpu.memory_space<vmem>>, vector<1x144x384xf32>
    %53 = vector.shape_cast %52 : vector<1x144x384xf32> to vector<144x384xf32>
    %cst_29 = arith.constant dense<0.000000e+00> : vector<16x384xf32>
    %54 = tpu.matmul %50, %53, %cst_29 {dimension_numbers = #tpu.dot_dimension_numbers<[1], [0], [0], [1], [0, 0, 1, 1], [], []>} : vector<16x144xf32>, vector<144x384xf32>, vector<16x384xf32> -> vector<16x384xf32>
    %55 = arith.index_cast %c3_i32 : i32 to index
    %c0_30 = arith.constant 0 : index
    %c0_31 = arith.constant 0 : index
    %56 = vector.load %arg4[%55, %c0_30, %c0_31] : memref<4x1x384xf32, #tpu.memory_space<vmem>>, vector<1x1x384xf32>
    %57 = vector.shape_cast %56 : vector<1x1x384xf32> to vector<1x384xf32>
    %58 = vector.broadcast %57 : vector<1x384xf32> to vector<16x384xf32>
    %59 = arith.addf %54, %58 : vector<16x384xf32>
    %60 = arith.index_cast %c3_i32 : i32 to index
    %c0_32 = arith.constant 0 : index
    %c0_33 = arith.constant 0 : index
    %61 = vector.load %arg5[%60, %c0_32, %c0_33] : memref<4x16x384xf32, #tpu.memory_space<vmem>>, vector<1x16x384xf32>
    %62 = vector.shape_cast %61 : vector<1x16x384xf32> to vector<16x384xf32>
    %63 = vector.shape_cast %59 : vector<16x384xf32> to vector<1x16x384xf32>
    tpu.vector_store %arg5[%60, %c0_32, %c0_33], %63 {strides = array<i32>} : memref<4x16x384xf32, #tpu.memory_space<vmem>>, vector<1x16x384xf32>,
    %c4_i32 = arith.constant 4 : i32
    return
  }
  func.func @transform_0(%arg0: i32, %arg1: i32) -> (i32, i32, i32) {
    %c0_i32 = arith.constant 0 : i32
    %c0_i32_0 = arith.constant 0 : i32
    return %arg0, %arg1, %c0_i32 : i32, i32, i32
  }
  func.func @transform_1(%arg0: i32, %arg1: i32) -> (i32, i32, i32) {
    %c0_i32 = arith.constant 0 : i32
    %c0_i32_0 = arith.constant 0 : i32
    %c0_i32_1 = arith.constant 0 : i32
    return %arg0, %c0_i32, %c0_i32_0 : i32, i32, i32
  }
  func.func @transform_2(%arg0: i32, %arg1: i32) -> (i32, i32, i32) {
    %c0_i32 = arith.constant 0 : i32
    %c0_i32_0 = arith.constant 0 : i32
    %c0_i32_1 = arith.constant 0 : i32
    return %arg0, %c0_i32, %c0_i32_0 : i32, i32, i32
  }
  func.func @transform_3(%arg0: i32, %arg1: i32) -> (i32, i32, i32) {
    %c0_i32 = arith.constant 0 : i32
    %c0_i32_0 = arith.constant 0 : i32
    return %arg0, %arg1, %c0_i32 : i32, i32, i32
  }
}

</mosaic_0001>

<llo_original>
// kernel: separate_linear.1
$region0: #{separate_linear.1}
  #allocation0 [shape = 'u32[]', space=smem, size = 0x4, offset = 0x4, fixed_abs, tag = 'smem constant byte address 0x4 - core index']
  #allocation1 [shape = 'u32[144,128]{1,0:T(1,128)}', space=vmem, size = 0x12000, scoped, tag = 'internal scratch']
  %s0 = inlined_call_operand.vmem [shape: f32[16,16,144], index: 0, kind: input, shape index: {}]
  %s1 = inlined_call_operand.hbm [shape: f32[16,144,384], index: 1, kind: input, shape index: {}]
  %s2 = inlined_call_operand.hbm [shape: f32[16,1,384], index: 2, kind: input, shape index: {}]
  %s3 = inlined_call_operand.vmem [shape: f32[16,16,384], index: 3, kind: output, shape index: {}]
  %s4 = sld [smem:[#allocation0]]
  $region53: #{separate_linear.1} parent=0
    _
  %s6 = ssub.s32 1, %s4
  %s7 = scalar_select 0, %s6, %s4
  $region1: #{separate_linear.1} parent=0
    #allocation2 [shape = 'u8[1769472]{0}', space=vmem, size = 0x1b0000, scoped, tag = 'input window, operand 1']
    #allocation3 [shape = 's32[2]{0}', space=sflag, size = 0x8, scoped, tag = 'scoped memory for separate_linear.1']
    #allocation4 [shape = 'u8[12288]{0}', space=vmem, size = 0x3000, scoped, tag = 'input window, operand 2']
    #allocation5 [shape = 's32[2]{0}', space=sflag, size = 0x8, scoped, tag = 'scoped memory for separate_linear.1']
    %8 = vsyncpa [#allocation3], 0
    %s9 = scalar_lea.sflag [#allocation3], 1
    %10 = vsyncpa %s9, 0
    %11 = vsyncpa [#allocation5], 0
    %s12 = scalar_lea.sflag [#allocation5], 1
    %13 = vsyncpa %s12, 0
    loop: start=0, step=1, limit=6
    $region2: #{separate_linear.1} parent=1 // loop_pre_header
      _
    $region3: #{separate_linear.1} parent=1 // loop_header
      %s15 = sphi 0, %s19
      %p16 = scmp.ge.s32.totalorder %s15, 6
      %s22 = sphi 0, %s34
      %s23 = sphi 0, %s30
      %s24 = sphi 0, %s22
      %s25 = sphi 0, %s23
      %s26 = sphi 0, %s24
      %s27 = sphi 0, %s25
      %s39 = sphi 0, %s41
      %s42 = sphi 0, %s39
      %s43 = sphi 0, %s42
      %s59 = sphi 0, %s43
      %s65 = sphi 0, %s67
      %s68 = sphi 0, %s65
      %s69 = sphi 0, %s68
      %s85 = sphi 0, %s69
      %s91 = sphi 0, %s93
      %s94 = sphi 0, %s91
      %s95 = sphi 0, %s94
      %s111 = sphi 0, %s95
      %s119 = sphi 0, %s121
      %s122 = sphi 0, %s119
      %s123 = sphi 0, %s122
      %s139 = sphi 0, %s123
    $region4: #{separate_linear.1} parent=1 // loop_header_branch
      %18 = sbr.rel (%p16) target = $region8
    $region5: #{separate_linear.1} parent=1 // loop_body
      %s20 = ssub.s32 %s15, 1
      %s21 = ssub.s32 %s15, 2
      %s28 = sadd.s32 1, %s23
      %p29 = scmp.ge.s32.totalorder %s28, 1
      %s30 = scalar_select %p29, 0, %s28
      %s31 = sadd.s32 1, %s22
      %s32 = scalar_select %p29, %s31, %s22
      %p33 = scmp.ge.s32.totalorder %s32, 4
      %s34 = scalar_select %p33, 0, %s32
      %s35 = ssub.s32 %s22, %s34
      %s36 = ssub.s32 %s23, %s30
      %s37 = sor.u32 %s35, %s36
      %p38 = scmp.eq.s32.totalorder %s37, 0
      %s40 = sadd.s32 %s39, 1
      %s41 = scalar_select %p38, %s39, %s40
      %p44 = pneg %p38
      %p45 = scmp.eq.s32.totalorder %s15, 3
      %p46 = por %p44, %p45
      %p47 = scmp.ne.s32.totalorder %s39, %s42
      %p48 = scmp.eq.s32.totalorder %s15, 0
      %p49 = por %p47, %p48
      %p50 = scmp.ne.s32.totalorder %s39, %s42
      %p51 = scmp.eq.s32.totalorder %s20, 3
      %p52 = por %p50, %p51
      %p53 = scmp.ne.s32.totalorder %s42, %s43
      %p54 = scmp.eq.s32.totalorder %s20, 0
      %p55 = por %p53, %p54
      %p56 = scmp.ne.s32.totalorder %s42, %s43
      %p57 = scmp.eq.s32.totalorder %s21, 3
      %p58 = por %p56, %p57
      %p60 = scmp.ne.s32.totalorder %s43, %s59
      %p61 = scmp.eq.s32.totalorder %s21, 0
      %p62 = por %p60, %p61
      %s63 = ssub.s32 %s22, %s34
      %p64 = scmp.eq.s32.totalorder %s63, 0
      %s66 = sadd.s32 %s65, 1
      %s67 = scalar_select %p64, %s65, %s66
      %p70 = pneg %p64
      %p71 = scmp.eq.s32.totalorder %s15, 3
      %p72 = por %p70, %p71
      %p73 = scmp.ne.s32.totalorder %s65, %s68
      %p74 = scmp.eq.s32.totalorder %s15, 0
      %p75 = por %p73, %p74
      %p76 = scmp.ne.s32.totalorder %s65, %s68
      %p77 = scmp.eq.s32.totalorder %s20, 3
      %p78 = por %p76, %p77
      %p79 = scmp.ne.s32.totalorder %s68, %s69
      %p80 = scmp.eq.s32.totalorder %s20, 0
      %p81 = por %p79, %p80
      %p82 = scmp.ne.s32.totalorder %s68, %s69
      %p83 = scmp.eq.s32.totalorder %s21, 3
      %p84 = por %p82, %p83
      %p86 = scmp.ne.s32.totalorder %s69, %s85
      %p87 = scmp.eq.s32.totalorder %s21, 0
      %p88 = por %p86, %p87
      %s89 = ssub.s32 %s22, %s34
      %p90 = scmp.eq.s32.totalorder %s89, 0
      %s92 = sadd.s32 %s91, 1
      %s93 = scalar_select %p90, %s91, %s92
      %p96 = pneg %p90
      %p97 = scmp.eq.s32.totalorder %s15, 3
      %p98 = por %p96, %p97
      %p99 = scmp.ne.s32.totalorder %s91, %s94
      %p100 = scmp.eq.s32.totalorder %s15, 0
      %p101 = por %p99, %p100
      %p102 = scmp.ne.s32.totalorder %s91, %s94
      %p103 = scmp.eq.s32.totalorder %s20, 3
      %p104 = por %p102, %p103
      %p105 = scmp.ne.s32.totalorder %s94, %s95
      %p106 = scmp.eq.s32.totalorder %s20, 0
      %p107 = por %p105, %p106
      %p108 = scmp.ne.s32.totalorder %s94, %s95
      %p109 = scmp.eq.s32.totalorder %s21, 3
      %p110 = por %p108, %p109
      %p112 = scmp.ne.s32.totalorder %s95, %s111
      %p113 = scmp.eq.s32.totalorder %s21, 0
      %p114 = por %p112, %p113
      %s115 = ssub.s32 %s22, %s34
      %s116 = ssub.s32 %s23, %s30
      %s117 = sor.u32 %s115, %s116
      %p118 = scmp.eq.s32.totalorder %s117, 0
      %s120 = sadd.s32 %s119, 1
      %s121 = scalar_select %p118, %s119, %s120
      %p124 = pneg %p118
      %p125 = scmp.eq.s32.totalorder %s15, 3
      %p126 = por %p124, %p125
      %p127 = scmp.ne.s32.totalorder %s119, %s122
      %p128 = scmp.eq.s32.totalorder %s15, 0
      %p129 = por %p127, %p128
      %p130 = scmp.ne.s32.totalorder %s119, %s122
      %p131 = scmp.eq.s32.totalorder %s20, 3
      %p132 = por %p130, %p131
      %p133 = scmp.ne.s32.totalorder %s122, %s123
      %p134 = scmp.eq.s32.totalorder %s20, 0
      %p135 = por %p133, %p134
      %p136 = scmp.ne.s32.totalorder %s122, %s123
      %p137 = scmp.eq.s32.totalorder %s21, 3
      %p138 = por %p136, %p137
      %p140 = scmp.ne.s32.totalorder %s123, %s139
      %p141 = scmp.eq.s32.totalorder %s21, 0
      %p142 = por %p140, %p141
      %p143 = scmp.le.s32.totalorder 1, %s15
      %p144 = scmp.lt.s32.totalorder %s15, 5
      %p145 = pnand %p143, %p144
      %p146 = pneg %p145
      // Predicated region
      $region9: #{separate_linear.1} parent=5 // pred_check
        _
      $region10: #{separate_linear.1} parent=5 // pred_check_branch
        %148 = sbr.rel (%p145) target = $region12
      $region11: #{separate_linear.1} parent=5 // pred_region
        %s149 = ssub.s32 %s15, 1
      $region12: #{separate_linear.1} parent=5 // pred_fallthru
        _
      %p150 = scmp.lt.s32.totalorder %s15, 4
      // Predicated region
      $region13: #{separate_linear.1} parent=5 // pred_check
        %p151 = pneg %p150
      $region14: #{separate_linear.1} parent=5 // pred_check_branch
        %153 = sbr.rel (%p151) target = $region16
      $region15: #{separate_linear.1} parent=5 // pred_region
        // Predicated region
        $region17: #{separate_linear.1} parent=15 // pred_check
          %p154 = pneg %p49
        $region18: #{separate_linear.1} parent=15 // pred_check_branch
          %156 = sbr.rel (%p154) target = $region20
        $region19: #{separate_linear.1} parent=15 // pred_region
          %s157 = smul.u32 4, %s22
          %s158 = smul.u32 2, %s23
          %p159 = scmp.lt.s32.totalorder %s157, 15
          %s160 = scalar_select %p159, %s157, 15
          %p161 = scmp.lt.s32.totalorder %s158, 1
          %s162 = scalar_select %p161, %s158, 1
          %s163 = smul.addr %s162, 2
          %s164 = smul.addr %s160, 4
          %s165 = sadd.s32 %s163, %s164
          %s166 = smul.addr %s165, 8
          %s167 = scalar_lea.vmem %s0, %s166
          %s168 = smul.u32 4, %s22
          %s169 = smul.u32 2, %s23
        $region20: #{separate_linear.1} parent=15 // pred_fallthru
          _
        // Predicated region
        $region21: #{separate_linear.1} parent=15 // pred_check
          %p170 = pneg %p75
        $region22: #{separate_linear.1} parent=15 // pred_check_branch
          %172 = sbr.rel (%p170) target = $region24
        $region23: #{separate_linear.1} parent=15 // pred_region
          %s173 = sand.u32 %s65, 1
          %s174 = scalar_lea.sflag [#allocation3], %s173
          %s175 = sand.u32 %s65, 1
          %s176 = smul.addr %s175, 1728
          %s177 = scalar_lea.vmem [#allocation2], %s176
          %s178 = smul.u32 4, %s22
          %s180 = ssub.s32 27648, 27648
          %181 = vsyncadd %s174, %s180
          %s182 = smul.addr %s178, 54
          %s183 = smul.addr %s182, 128
          %s184 = scalar_lea.hbm %s1, %s183
          %s185 = sshll.u32 %s177, 4
          %s186 = int_to_ptr.vmem [resolvable:$true] %s185
          %191 = dma.hbm_to_vmem [thread:$0]  %s184, 27648, %s186, %s174, 384, 384, 24
        $region24: #{separate_linear.1} parent=15 // pred_fallthru
          _
        // Predicated region
        $region25: #{separate_linear.1} parent=15 // pred_check
          %p192 = pneg %p101
        $region26: #{separate_linear.1} parent=15 // pred_check_branch
          %194 = sbr.rel (%p192) target = $region28
        $region27: #{separate_linear.1} parent=15 // pred_region
          %s195 = sand.u32 %s91, 1
          %s196 = scalar_lea.sflag [#allocation5], %s195
          %s197 = sand.u32 %s91, 1
          %s198 = smul.addr %s197, 12
          %s199 = scalar_lea.vmem [#allocation4], %s198
          %s200 = smul.u32 4, %s22
          %s202 = ssub.s32 192, 192
          %203 = vsyncadd %s196, %s202
          %s204 = smul.addr %s200, 3
          %s205 = smul.addr %s204, 16
          %s206 = scalar_lea.hbm %s2, %s205
          %s207 = sshll.u32 %s199, 4
          %s208 = int_to_ptr.vmem [resolvable:$true] %s207
          %213 = dma.hbm_to_vmem [thread:$0]  %s206, 192, %s208, %s196, 48, 48, 3
        $region28: #{separate_linear.1} parent=15 // pred_fallthru
          _
      $region16: #{separate_linear.1} parent=5 // pred_fallthru
        _
      %p214 = scmp.le.s32.totalorder 1, %s15
      %p215 = scmp.lt.s32.totalorder %s15, 5
      %p216 = pnand %p214, %p215
      %p217 = pneg %p216
      // Predicated region
      $region29: #{separate_linear.1} parent=5 // pred_check
        _
      $region30: #{separate_linear.1} parent=5 // pred_check_branch
        %219 = sbr.rel (%p216) target = $region32
      $region31: #{separate_linear.1} parent=5 // pred_region
        %s220 = ssub.s32 %s15, 1
        %s221 = sand.u32 %s68, 1
        %s222 = scalar_lea.sflag [#allocation3], %s221
        %s223 = sand.u32 %s68, 1
        %s224 = smul.addr %s223, 1728
        %s225 = scalar_lea.vmem [#allocation2], %s224
        // Predicated region
        $region33: #{separate_linear.1} parent=31 // pred_check
          %p226 = pneg %p81
        $region34: #{separate_linear.1} parent=31 // pred_check_branch
          %228 = sbr.rel (%p226) target = $region36
        $region35: #{separate_linear.1} parent=31 // pred_region
          %229 = dma.done %s222, 27648
        $region36: #{separate_linear.1} parent=31 // pred_fallthru
          _
        %s230 = sand.u32 %s94, 1
        %s231 = scalar_lea.sflag [#allocation5], %s230
        %s232 = sand.u32 %s94, 1
        %s233 = smul.addr %s232, 12
        %s234 = scalar_lea.vmem [#allocation4], %s233
        // Predicated region
        $region37: #{separate_linear.1} parent=31 // pred_check
          %p235 = pneg %p107
        $region38: #{separate_linear.1} parent=31 // pred_check_branch
          %237 = sbr.rel (%p235) target = $region40
        $region39: #{separate_linear.1} parent=31 // pred_region
          %238 = dma.done %s231, 192
        $region40: #{separate_linear.1} parent=31 // pred_fallthru
          _
        %s239 = smul.u32 4, %s24
        %s240 = smul.u32 2, %s25
        %p241 = scmp.lt.s32.totalorder %s239, 15
        %s242 = scalar_select %p241, %s239, 15
        %p243 = scmp.lt.s32.totalorder %s240, 1
        %s244 = scalar_select %p243, %s240, 1
        %s245 = smul.addr %s244, 2
        %s246 = smul.addr %s242, 4
        %s247 = sadd.s32 %s245, %s246
        %s248 = smul.addr %s247, 8
        %s249 = scalar_lea.vmem %s0, %s248
        %p250 = pneg %p55
        %p251 = pneg %p52
        %s252 = sand.u32 %s68, 1
        %s253 = scalar_lea.sflag [#allocation3], %s252
        %s254 = sand.u32 %s68, 1
        %s255 = smul.addr %s254, 1728
        %s256 = scalar_lea.vmem [#allocation2], %s255
        %p257 = pneg %p81
        %p258 = pneg %p78
        %s259 = sand.u32 %s94, 1
        %s260 = scalar_lea.sflag [#allocation5], %s259
        %s261 = sand.u32 %s94, 1
        %s262 = smul.addr %s261, 12
        %s263 = scalar_lea.vmem [#allocation4], %s262
        %p264 = pneg %p107
        %p265 = pneg %p104
        %p266 = pneg %p135
        %p267 = pneg %p132
        %s268 = smul.u32 4, %s24
        %s269 = smul.u32 2, %s25
        %p270 = scmp.lt.s32.totalorder %s268, 15
        %s271 = scalar_select %p270, %s268, 15
        %p272 = scmp.lt.s32.totalorder %s269, 1
        %s273 = scalar_select %p272, %s269, 1
        %s274 = smul.addr %s273, 3
        %s275 = smul.addr %s271, 6
        %s276 = sadd.s32 %s274, %s275
        %s277 = smul.addr %s276, 8
        %s278 = scalar_lea.vmem %s3, %s277
        %s279 = smul.u32 4, %s24
        %s280 = smul.u32 2, %s25
        %p281 = scmp.lt.s32.totalorder %s279, 15
        %s282 = scalar_select %p281, %s279, 15
        %p283 = scmp.lt.s32.totalorder %s280, 1
        %s284 = scalar_select %p283, %s280, 1
        %s285 = smul.addr %s284, 2
        %s286 = smul.addr %s282, 4
        %s287 = sadd.s32 %s285, %s286
        %s288 = smul.addr %s287, 8
        %s289 = scalar_lea.vmem %s0, %s288
        %s290 = smul.u32 4, %s24
        %s291 = smul.u32 2, %s25
        %s292 = smul.u32 4, %s24
        %s293 = smul.u32 4, %s24
        %s294 = smul.u32 4, %s24
        %s295 = smul.u32 2, %s25
        %p296 = scmp.lt.s32.totalorder %s294, 15
        %s297 = scalar_select %p296, %s294, 15
        %p298 = scmp.lt.s32.totalorder %s295, 1
        %s299 = scalar_select %p298, %s295, 1
        %s300 = smul.addr %s299, 3
        %s301 = smul.addr %s297, 6
        %s302 = sadd.s32 %s300, %s301
        %s303 = smul.addr %s302, 8
        %s304 = scalar_lea.vmem %s3, %s303
        %s305 = smul.u32 4, %s24
        %s306 = smul.u32 2, %s25
        %v307 = vld [vmem:[%s289] sm:$0xff]
        %v308 = vld [vmem:[%s289 + $0x8] sm:$0xff]
        %v309 = vld [vmem:[%s289 + $0x10] sm:$0xff]
        %v310 = vld [vmem:[%s289 + $0x18] sm:$0xff]
        %v311 = vld [vmem:[%s225] sm:$0xff]
        %v312 = vld [vmem:[%s225 + $0x8] sm:$0xff]
        %v313 = vld [vmem:[%s225 + $0x10] sm:$0xff]
        %v314 = vld [vmem:[%s225 + $0x18] sm:$0xff]
        %v315 = vld [vmem:[%s225 + $0x20] sm:$0xff]
        %v316 = vld [vmem:[%s225 + $0x28] sm:$0xff]
        %v317 = vld [vmem:[%s225 + $0x30] sm:$0xff]
        %v318 = vld [vmem:[%s225 + $0x38] sm:$0xff]
        %v319 = vld [vmem:[%s225 + $0x40] sm:$0xff]
        %v320 = vld [vmem:[%s225 + $0x48] sm:$0xff]
        %v321 = vld [vmem:[%s225 + $0x50] sm:$0xff]
        %v322 = vld [vmem:[%s225 + $0x58] sm:$0xff]
        %v323 = vld [vmem:[%s225 + $0x60] sm:$0xff]
        %v324 = vld [vmem:[%s225 + $0x68] sm:$0xff]
        %v325 = vld [vmem:[%s225 + $0x70] sm:$0xff]
        %v326 = vld [vmem:[%s225 + $0x78] sm:$0xff]
        %v327 = vld [vmem:[%s225 + $0x80] sm:$0xff]
        %v328 = vld [vmem:[%s225 + $0x88] sm:$0xff]
        %v329 = vld [vmem:[%s225 + $0x90] sm:$0xff]
        %v330 = vld [vmem:[%s225 + $0x98] sm:$0xff]
        %v331 = vld [vmem:[%s225 + $0xa0] sm:$0xff]
        %v332 = vld [vmem:[%s225 + $0xa8] sm:$0xff]
        %v333 = vld [vmem:[%s225 + $0xb0] sm:$0xff]
        %v334 = vld [vmem:[%s225 + $0xb8] sm:$0xff]
        %v335 = vld [vmem:[%s225 + $0xc0] sm:$0xff]
        %v336 = vld [vmem:[%s225 + $0xc8] sm:$0xff]
        %v337 = vld [vmem:[%s225 + $0xd0] sm:$0xff]
        %v338 = vld [vmem:[%s225 + $0xd8] sm:$0xff]
        %v339 = vld [vmem:[%s225 + $0xe0] sm:$0xff]
        %v340 = vld [vmem:[%s225 + $0xe8] sm:$0xff]
        %v341 = vld [vmem:[%s225 + $0xf0] sm:$0xff]
        %v342 = vld [vmem:[%s225 + $0xf8] sm:$0xff]
        %v343 = vld [vmem:[%s225 + $0x100] sm:$0xff]
        %v344 = vld [vmem:[%s225 + $0x108] sm:$0xff]
        %v345 = vld [vmem:[%s225 + $0x110] sm:$0xff]
        %v346 = vld [vmem:[%s225 + $0x118] sm:$0xff]
        %v347 = vld [vmem:[%s225 + $0x120] sm:$0xff]
        %v348 = vld [vmem:[%s225 + $0x128] sm:$0xff]
        %v349 = vld [vmem:[%s225 + $0x130] sm:$0xff]
        %v350 = vld [vmem:[%s225 + $0x138] sm:$0xff]
        %v351 = vld [vmem:[%s225 + $0x140] sm:$0xff]
        %v352 = vld [vmem:[%s225 + $0x148] sm:$0xff]
        %v353 = vld [vmem:[%s225 + $0x150] sm:$0xff]
        %v354 = vld [vmem:[%s225 + $0x158] sm:$0xff]
        %v355 = vld [vmem:[%s225 + $0x160] sm:$0xff]
        %v356 = vld [vmem:[%s225 + $0x168] sm:$0xff]
        %v357 = vld [vmem:[%s225 + $0x170] sm:$0xff]
        %v358 = vld [vmem:[%s225 + $0x178] sm:$0xff]
        %v359 = vld [vmem:[%s225 + $0x180] sm:$0xff]
        %v360 = vld [vmem:[%s225 + $0x188] sm:$0xff]
        %v361 = vld [vmem:[%s225 + $0x190] sm:$0xff]
        %v362 = vld [vmem:[%s225 + $0x198] sm:$0xff]
        %v363 = vld [vmem:[%s225 + $0x1a0] sm:$0xff]
        %v364 = vld [vmem:[%s225 + $0x1a8] sm:$0xff]
        %v365 = vld [vmem:[%s234] sm:$0x7]
        %v367 = vlaneseq
        %v368 = vshrl.u32 %v367, 7
        %v369 = vsub.s32 0, %v368
        %v370 = vrot.slane %v365, %v369
        %v371 = vlaneseq
        %v372 = vshrl.u32 %v371, 7
        %v373 = vsub.s32 1, %v372
        %v374 = vrot.slane %v365, %v373
        %v375 = vlaneseq
        %v376 = vshrl.u32 %v375, 7
        %v377 = vsub.s32 2, %v376
        %v378 = vrot.slane %v365, %v377
        %vm382 = vcmask 130048
        %v384 = vsel %vm382, %v308, 0
        %v387 = vsel %vm382, %v310, 0
        %389 = vmatprep.subr.mxu0 %v312
        %390 = vmatpush1.msra.mxu0 %v311
        %391 = vmatprep.subr.mxu0 %v315
        %392 = vmatpush1.msra.mxu0 %v314
        %393 = vmatprep.subr.mxu0 %v318
        %394 = vmatpush1.msra.mxu0 %v317
        %395 = vmatprep.subr.mxu0 %v321
        %396 = vmatpush1.msra.mxu0 %v320
        %397 = vmatprep.subr.mxu0 %v324
        %398 = vmatpush1.msra.mxu0 %v323
        %399 = vmatprep.subr.mxu0 %v327
        %400 = vmatpush1.msra.mxu0 %v326
        %401 = vmatprep.subr.mxu0 %v330
        %402 = vmatpush1.msra.mxu0 %v329
        %403 = vmatprep.subr.mxu0 %v333
        %404 = vmatpush1.msra.mxu0 %v332
        %405 = vmatprep.subr.mxu0 %v336
        %406 = vmatpush1.msra.mxu0 %v335
        %407 = vmatprep.subr.mxu0 %v339
        %408 = vmatpush1.msra.mxu0 %v338
        %409 = vmatprep.subr.mxu0 %v342
        %410 = vmatpush1.msra.mxu0 %v341
        %411 = vmatprep.subr.mxu0 %v345
        %412 = vmatpush1.msra.mxu0 %v344
        %413 = vmatprep.subr.mxu0 %v348
        %414 = vmatpush1.msra.mxu0 %v347
        %415 = vmatprep.subr.mxu0 %v351
        %416 = vmatpush1.msra.mxu0 %v350
        %417 = vmatprep.subr.mxu0 %v354
        %418 = vmatpush1.msra.mxu0 %v353
        %419 = vmatprep.subr.mxu0 %v357
        %420 = vmatpush1.msra.mxu0 %v356
        %421 = vmatprep.subr.mxu0 %v360
        %422 = vmatpush1.msra.mxu0 %v359
        %423 = vmatprep.subr.mxu0 %v363
        %424 = vmatpush1.msra.mxu0 %v362
        %425 = vmatprep.subr.mxu0 0.0
        %426 = vmatpush1.msra.mxu0 0.0
        %427 = vmatprep.subr.mxu0 0.0
        %428 = vmatpush1.msra.mxu0 0.0
        %429 = vmatprep.subr.mxu0 0.0
        %430 = vmatpush1.msra.mxu0 0.0
        %431 = vmatprep.subr.mxu0 0.0
        %432 = vmatpush1.msra.mxu0 0.0
        %433 = vmatprep.subr.mxu0 0.0
        %434 = vmatpush1.msra.mxu0 0.0
        %435 = vmatprep.subr.mxu0 0.0
        %436 = vmatpush1.msra.mxu0 0.0
        %437 = vmatprep.subr.mxu0 0.0
        %438 = vmatpush1.msra.mxu0 0.0
        %439 = vmatprep.subr.mxu0 0.0
        %440 = vmatpush1.msra.mxu0 0.0
        %441 = vmatprep.subr.mxu0 0.0
        %442 = vmatpush1.msra.mxu0 0.0
        %443 = vmatprep.subr.mxu0 0.0
        %444 = vmatpush1.msra.mxu0 0.0
        %445 = vmatprep.subr.mxu0 0.0
        %446 = vmatpush1.msra.mxu0 0.0
        %447 = vmatprep.subr.mxu0 0.0
        %448 = vmatpush1.msra.mxu0 0.0
        %449 = vmatprep.subr.mxu0 0.0
        %450 = vmatpush1.msra.mxu0 0.0
        %451 = vmatprep.subr.mxu0 0.0
        %452 = vmatpush1.msra.mxu0 0.0
        %453 = vmatprep.mubr.f32.mxu0 %v384
        %454 = vmatmul.mubr.f32.gmra.mrb[0].mxu0 %v307
        %v455 = vpop.f32.mrb[0].mxu0
        %v456 = vadd.f32 %v370, %v455
        %v457 = vpop.f32.mrb[0].mxu0
        %v458 = vadd.f32 %v374, %v457
        %459 = vmatprep.mubr.f32.mxu0 %v387
        %460 = vmatmul.mubr.f32.gmra.mrb[0].mxu0 %v309
        %v461 = vpop.f32.mrb[0].mxu0
        %v462 = vadd.f32 %v370, %v461
        %v463 = vpop.f32.mrb[0].mxu0
        %v464 = vadd.f32 %v374, %v463
        %465 = vdwg.mxu0
        %466 = vmatprep.subr.mxu0 0.0
        %467 = vmatpush1.msra.mxu0 %v313
        %468 = vmatprep.subr.mxu0 0.0
        %469 = vmatpush1.msra.mxu0 %v316
        %470 = vmatprep.subr.mxu0 0.0
        %471 = vmatpush1.msra.mxu0 %v319
        %472 = vmatprep.subr.mxu0 0.0
        %473 = vmatpush1.msra.mxu0 %v322
        %474 = vmatprep.subr.mxu0 0.0
        %475 = vmatpush1.msra.mxu0 %v325
        %476 = vmatprep.subr.mxu0 0.0
        %477 = vmatpush1.msra.mxu0 %v328
        %478 = vmatprep.subr.mxu0 0.0
        %479 = vmatpush1.msra.mxu0 %v331
        %480 = vmatprep.subr.mxu0 0.0
        %481 = vmatpush1.msra.mxu0 %v334
        %482 = vmatprep.subr.mxu0 0.0
        %483 = vmatpush1.msra.mxu0 %v337
        %484 = vmatprep.subr.mxu0 0.0
        %485 = vmatpush1.msra.mxu0 %v340
        %486 = vmatprep.subr.mxu0 0.0
        %487 = vmatpush1.msra.mxu0 %v343
        %488 = vmatprep.subr.mxu0 0.0
        %489 = vmatpush1.msra.mxu0 %v346
        %490 = vmatprep.subr.mxu0 0.0
        %491 = vmatpush1.msra.mxu0 %v349
        %492 = vmatprep.subr.mxu0 0.0
        %493 = vmatpush1.msra.mxu0 %v352
        %494 = vmatprep.subr.mxu0 0.0
        %495 = vmatpush1.msra.mxu0 %v355
        %496 = vmatprep.subr.mxu0 0.0
        %497 = vmatpush1.msra.mxu0 %v358
        %498 = vmatprep.subr.mxu0 0.0
        %499 = vmatpush1.msra.mxu0 %v361
        %500 = vmatprep.subr.mxu0 0.0
        %501 = vmatpush1.msra.mxu0 %v364
        %502 = vmatprep.subr.mxu0 0.0
        %503 = vmatpush1.msra.mxu0 0.0
        %504 = vmatprep.subr.mxu0 0.0
        %505 = vmatpush1.msra.mxu0 0.0
        %506 = vmatprep.subr.mxu0 0.0
        %507 = vmatpush1.msra.mxu0 0.0
        %508 = vmatprep.subr.mxu0 0.0
        %509 = vmatpush1.msra.mxu0 0.0
        %510 = vmatprep.subr.mxu0 0.0
        %511 = vmatpush1.msra.mxu0 0.0
        %512 = vmatprep.subr.mxu0 0.0
        %513 = vmatpush1.msra.mxu0 0.0
        %514 = vmatprep.subr.mxu0 0.0
        %515 = vmatpush1.msra.mxu0 0.0
        %516 = vmatprep.subr.mxu0 0.0
        %517 = vmatpush1.msra.mxu0 0.0
        %518 = vmatprep.subr.mxu0 0.0
        %519 = vmatpush1.msra.mxu0 0.0
        %520 = vmatprep.subr.mxu0 0.0
        %521 = vmatpush1.msra.mxu0 0.0
        %522 = vmatprep.subr.mxu0 0.0
        %523 = vmatpush1.msra.mxu0 0.0
        %524 = vmatprep.subr.mxu0 0.0
        %525 = vmatpush1.msra.mxu0 0.0
        %526 = vmatprep.subr.mxu0 0.0
        %527 = vmatpush1.msra.mxu0 0.0
        %528 = vmatprep.subr.mxu0 0.0
        %529 = vmatpush1.msra.mxu0 0.0
        %530 = vmatprep.mubr.f32.mxu0 %v384
        %531 = vmatmul.mubr.f32.gmra.mrb[0].mxu0 %v307
        %v532 = vpop.f32.mrb[0].mxu0
        %v533 = vadd.f32 %v378, %v532
        %v534 = vpop.f32.mrb[0].mxu0
        %535 = vmatprep.mubr.f32.mxu0 %v387
        %536 = vmatmul.mubr.f32.gmra.mrb[0].mxu0 %v309
        %v537 = vpop.f32.mrb[0].mxu0
        %v538 = vadd.f32 %v378, %v537
        %v539 = vpop.f32.mrb[0].mxu0
        %540 = vdwg.mxu0
        %541 = vst [vmem:[%s304] sm:$0xff] %v456
        %542 = vst [vmem:[%s304 + $0x8] sm:$0xff] %v458
        %543 = vst [vmem:[%s304 + $0x10] sm:$0xff] %v533
        %544 = vst [vmem:[%s304 + $0x18] sm:$0xff] %v462
        %545 = vst [vmem:[%s304 + $0x20] sm:$0xff] %v464
        %546 = vst [vmem:[%s304 + $0x28] sm:$0xff] %v538
        %s547 = scalar_lea.vmem %s289, 32
        %v548 = vld [vmem:[%s547] sm:$0xff]
        %v549 = vld [vmem:[%s547 + $0x8] sm:$0xff]
        %v550 = vld [vmem:[%s547 + $0x10] sm:$0xff]
        %v551 = vld [vmem:[%s547 + $0x18] sm:$0xff]
        %s552 = scalar_lea.vmem %s225, 432 [#allocation2]
        %v553 = vld [vmem:[%s552] sm:$0xff]
        %v554 = vld [vmem:[%s552 + $0x8] sm:$0xff]
        %v555 = vld [vmem:[%s552 + $0x10] sm:$0xff]
        %v556 = vld [vmem:[%s552 + $0x18] sm:$0xff]
        %v557 = vld [vmem:[%s552 + $0x20] sm:$0xff]
        %v558 = vld [vmem:[%s552 + $0x28] sm:$0xff]
        %v559 = vld [vmem:[%s552 + $0x30] sm:$0xff]
        %v560 = vld [vmem:[%s552 + $0x38] sm:$0xff]
        %v561 = vld [vmem:[%s552 + $0x40] sm:$0xff]
        %v562 = vld [vmem:[%s552 + $0x48] sm:$0xff]
        %v563 = vld [vmem:[%s552 + $0x50] sm:$0xff]
        %v564 = vld [vmem:[%s552 + $0x58] sm:$0xff]
        %v565 = vld [vmem:[%s552 + $0x60] sm:$0xff]
        %v566 = vld [vmem:[%s552 + $0x68] sm:$0xff]
        %v567 = vld [vmem:[%s552 + $0x70] sm:$0xff]
        %v568 = vld [vmem:[%s552 + $0x78] sm:$0xff]
        %v569 = vld [vmem:[%s552 + $0x80] sm:$0xff]
        %v570 = vld [vmem:[%s552 + $0x88] sm:$0xff]
        %v571 = vld [vmem:[%s552 + $0x90] sm:$0xff]
        %v572 = vld [vmem:[%s552 + $0x98] sm:$0xff]
        %v573 = vld [vmem:[%s552 + $0xa0] sm:$0xff]
        %v574 = vld [vmem:[%s552 + $0xa8] sm:$0xff]
        %v575 = vld [vmem:[%s552 + $0xb0] sm:$0xff]
        %v576 = vld [vmem:[%s552 + $0xb8] sm:$0xff]
        %v577 = vld [vmem:[%s552 + $0xc0] sm:$0xff]
        %v578 = vld [vmem:[%s552 + $0xc8] sm:$0xff]
        %v579 = vld [vmem:[%s552 + $0xd0] sm:$0xff]
        %v580 = vld [vmem:[%s552 + $0xd8] sm:$0xff]
        %v581 = vld [vmem:[%s552 + $0xe0] sm:$0xff]
        %v582 = vld [vmem:[%s552 + $0xe8] sm:$0xff]
        %v583 = vld [vmem:[%s552 + $0xf0] sm:$0xff]
        %v584 = vld [vmem:[%s552 + $0xf8] sm:$0xff]
        %v585 = vld [vmem:[%s552 + $0x100] sm:$0xff]
        %v586 = vld [vmem:[%s552 + $0x108] sm:$0xff]
        %v587 = vld [vmem:[%s552 + $0x110] sm:$0xff]
        %v588 = vld [vmem:[%s552 + $0x118] sm:$0xff]
        %v589 = vld [vmem:[%s552 + $0x120] sm:$0xff]
        %v590 = vld [vmem:[%s552 + $0x128] sm:$0xff]
        %v591 = vld [vmem:[%s552 + $0x130] sm:$0xff]
        %v592 = vld [vmem:[%s552 + $0x138] sm:$0xff]
        %v593 = vld [vmem:[%s552 + $0x140] sm:$0xff]
        %v594 = vld [vmem:[%s552 + $0x148] sm:$0xff]
        %v595 = vld [vmem:[%s552 + $0x150] sm:$0xff]
        %v596 = vld [vmem:[%s552 + $0x158] sm:$0xff]
        %v597 = vld [vmem:[%s552 + $0x160] sm:$0xff]
        %v598 = vld [vmem:[%s552 + $0x168] sm:$0xff]
        %v599 = vld [vmem:[%s552 + $0x170] sm:$0xff]
        %v600 = vld [vmem:[%s552 + $0x178] sm:$0xff]
        %v601 = vld [vmem:[%s552 + $0x180] sm:$0xff]
        %v602 = vld [vmem:[%s552 + $0x188] sm:$0xff]
        %v603 = vld [vmem:[%s552 + $0x190] sm:$0xff]
        %v604 = vld [vmem:[%s552 + $0x198] sm:$0xff]
        %v605 = vld [vmem:[%s552 + $0x1a0] sm:$0xff]
        %v606 = vld [vmem:[%s552 + $0x1a8] sm:$0xff]
        %s607 = scalar_lea.vmem %s234, 3 [#allocation4]
        %v608 = vld [vmem:[%s607] sm:$0x7]
        %v610 = vlaneseq
        %v611 = vshrl.u32 %v610, 7
        %v612 = vsub.s32 0, %v611
        %v613 = vrot.slane %v608, %v612
        %v614 = vlaneseq
        %v615 = vshrl.u32 %v614, 7
        %v616 = vsub.s32 1, %v615
        %v617 = vrot.slane %v608, %v616
        %v618 = vlaneseq
        %v619 = vshrl.u32 %v618, 7
        %v620 = vsub.s32 2, %v619
        %v621 = vrot.slane %v608, %v620
        %v626 = vsel %vm382, %v549, 0
        %v629 = vsel %vm382, %v551, 0
        %631 = vmatprep.subr.mxu0 %v554
        %632 = vmatpush1.msra.mxu0 %v553
        %633 = vmatprep.subr.mxu0 %v557
        %634 = vmatpush1.msra.mxu0 %v556
        %635 = vmatprep.subr.mxu0 %v560
        %636 = vmatpush1.msra.mxu0 %v559
        %637 = vmatprep.subr.mxu0 %v563
        %638 = vmatpush1.msra.mxu0 %v562
        %639 = vmatprep.subr.mxu0 %v566
        %640 = vmatpush1.msra.mxu0 %v565
        %641 = vmatprep.subr.mxu0 %v569
        %642 = vmatpush1.msra.mxu0 %v568
        %643 = vmatprep.subr.mxu0 %v572
        %644 = vmatpush1.msra.mxu0 %v571
        %645 = vmatprep.subr.mxu0 %v575
        %646 = vmatpush1.msra.mxu0 %v574
        %647 = vmatprep.subr.mxu0 %v578
        %648 = vmatpush1.msra.mxu0 %v577
        %649 = vmatprep.subr.mxu0 %v581
        %650 = vmatpush1.msra.mxu0 %v580
        %651 = vmatprep.subr.mxu0 %v584
        %652 = vmatpush1.msra.mxu0 %v583
        %653 = vmatprep.subr.mxu0 %v587
        %654 = vmatpush1.msra.mxu0 %v586
        %655 = vmatprep.subr.mxu0 %v590
        %656 = vmatpush1.msra.mxu0 %v589
        %657 = vmatprep.subr.mxu0 %v593
        %658 = vmatpush1.msra.mxu0 %v592
        %659 = vmatprep.subr.mxu0 %v596
        %660 = vmatpush1.msra.mxu0 %v595
        %661 = vmatprep.subr.mxu0 %v599
        %662 = vmatpush1.msra.mxu0 %v598
        %663 = vmatprep.subr.mxu0 %v602
        %664 = vmatpush1.msra.mxu0 %v601
        %665 = vmatprep.subr.mxu0 %v605
        %666 = vmatpush1.msra.mxu0 %v604
        %667 = vmatprep.subr.mxu0 0.0
        %668 = vmatpush1.msra.mxu0 0.0
        %669 = vmatprep.subr.mxu0 0.0
        %670 = vmatpush1.msra.mxu0 0.0
        %671 = vmatprep.subr.mxu0 0.0
        %672 = vmatpush1.msra.mxu0 0.0
        %673 = vmatprep.subr.mxu0 0.0
        %674 = vmatpush1.msra.mxu0 0.0
        %675 = vmatprep.subr.mxu0 0.0
        %676 = vmatpush1.msra.mxu0 0.0
        %677 = vmatprep.subr.mxu0 0.0
        %678 = vmatpush1.msra.mxu0 0.0
        %679 = vmatprep.subr.mxu0 0.0
        %680 = vmatpush1.msra.mxu0 0.0
        %681 = vmatprep.subr.mxu0 0.0
        %682 = vmatpush1.msra.mxu0 0.0
        %683 = vmatprep.subr.mxu0 0.0
        %684 = vmatpush1.msra.mxu0 0.0
        %685 = vmatprep.subr.mxu0 0.0
        %686 = vmatpush1.msra.mxu0 0.0
        %687 = vmatprep.subr.mxu0 0.0
        %688 = vmatpush1.msra.mxu0 0.0
        %689 = vmatprep.subr.mxu0 0.0
        %690 = vmatpush1.msra.mxu0 0.0
        %691 = vmatprep.subr.mxu0 0.0
        %692 = vmatpush1.msra.mxu0 0.0
        %693 = vmatprep.subr.mxu0 0.0
        %694 = vmatpush1.msra.mxu0 0.0
        %695 = vmatprep.mubr.f32.mxu0 %v626
        %696 = vmatmul.mubr.f32.gmra.mrb[0].mxu0 %v548
        %v697 = vpop.f32.mrb[0].mxu0
        %v698 = vadd.f32 %v613, %v697
        %v699 = vpop.f32.mrb[0].mxu0
        %v700 = vadd.f32 %v617, %v699
        %701 = vmatprep.mubr.f32.mxu0 %v629
        %702 = vmatmul.mubr.f32.gmra.mrb[0].mxu0 %v550
        %v703 = vpop.f32.mrb[0].mxu0
        %v704 = vadd.f32 %v613, %v703
        %v705 = vpop.f32.mrb[0].mxu0
        %v706 = vadd.f32 %v617, %v705
        %707 = vdwg.mxu0
        %708 = vmatprep.subr.mxu0 0.0
        %709 = vmatpush1.msra.mxu0 %v555
        %710 = vmatprep.subr.mxu0 0.0
        %711 = vmatpush1.msra.mxu0 %v558
        %712 = vmatprep.subr.mxu0 0.0
        %713 = vmatpush1.msra.mxu0 %v561
        %714 = vmatprep.subr.mxu0 0.0
        %715 = vmatpush1.msra.mxu0 %v564
        %716 = vmatprep.subr.mxu0 0.0
        %717 = vmatpush1.msra.mxu0 %v567
        %718 = vmatprep.subr.mxu0 0.0
        %719 = vmatpush1.msra.mxu0 %v570
        %720 = vmatprep.subr.mxu0 0.0
        %721 = vmatpush1.msra.mxu0 %v573
        %722 = vmatprep.subr.mxu0 0.0
        %723 = vmatpush1.msra.mxu0 %v576
        %724 = vmatprep.subr.mxu0 0.0
        %725 = vmatpush1.msra.mxu0 %v579
        %726 = vmatprep.subr.mxu0 0.0
        %727 = vmatpush1.msra.mxu0 %v582
        %728 = vmatprep.subr.mxu0 0.0
        %729 = vmatpush1.msra.mxu0 %v585
        %730 = vmatprep.subr.mxu0 0.0
        %731 = vmatpush1.msra.mxu0 %v588
        %732 = vmatprep.subr.mxu0 0.0
        %733 = vmatpush1.msra.mxu0 %v591
        %734 = vmatprep.subr.mxu0 0.0
        %735 = vmatpush1.msra.mxu0 %v594
        %736 = vmatprep.subr.mxu0 0.0
        %737 = vmatpush1.msra.mxu0 %v597
        %738 = vmatprep.subr.mxu0 0.0
        %739 = vmatpush1.msra.mxu0 %v600
        %740 = vmatprep.subr.mxu0 0.0
        %741 = vmatpush1.msra.mxu0 %v603
        %742 = vmatprep.subr.mxu0 0.0
        %743 = vmatpush1.msra.mxu0 %v606
        %744 = vmatprep.subr.mxu0 0.0
        %745 = vmatpush1.msra.mxu0 0.0
        %746 = vmatprep.subr.mxu0 0.0
        %747 = vmatpush1.msra.mxu0 0.0
        %748 = vmatprep.subr.mxu0 0.0
        %749 = vmatpush1.msra.mxu0 0.0
        %750 = vmatprep.subr.mxu0 0.0
        %751 = vmatpush1.msra.mxu0 0.0
        %752 = vmatprep.subr.mxu0 0.0
        %753 = vmatpush1.msra.mxu0 0.0
        %754 = vmatprep.subr.mxu0 0.0
        %755 = vmatpush1.msra.mxu0 0.0
        %756 = vmatprep.subr.mxu0 0.0
        %757 = vmatpush1.msra.mxu0 0.0
        %758 = vmatprep.subr.mxu0 0.0
        %759 = vmatpush1.msra.mxu0 0.0
        %760 = vmatprep.subr.mxu0 0.0
        %761 = vmatpush1.msra.mxu0 0.0
        %762 = vmatprep.subr.mxu0 0.0
        %763 = vmatpush1.msra.mxu0 0.0
        %764 = vmatprep.subr.mxu0 0.0
        %765 = vmatpush1.msra.mxu0 0.0
        %766 = vmatprep.subr.mxu0 0.0
        %767 = vmatpush1.msra.mxu0 0.0
        %768 = vmatprep.subr.mxu0 0.0
        %769 = vmatpush1.msra.mxu0 0.0
        %770 = vmatprep.subr.mxu0 0.0
        %771 = vmatpush1.msra.mxu0 0.0
        %772 = vmatprep.mubr.f32.mxu0 %v626
        %773 = vmatmul.mubr.f32.gmra.mrb[0].mxu0 %v548
        %v774 = vpop.f32.mrb[0].mxu0
        %v775 = vadd.f32 %v621, %v774
        %v776 = vpop.f32.mrb[0].mxu0
        %777 = vmatprep.mubr.f32.mxu0 %v629
        %778 = vmatmul.mubr.f32.gmra.mrb[0].mxu0 %v550
        %v779 = vpop.f32.mrb[0].mxu0
        %v780 = vadd.f32 %v621, %v779
        %v781 = vpop.f32.mrb[0].mxu0
        %782 = vdwg.mxu0
        %s783 = scalar_lea.vmem %s304, 48
        %784 = vst [vmem:[%s783] sm:$0xff] %v698
        %785 = vst [vmem:[%s783 + $0x8] sm:$0xff] %v700
        %786 = vst [vmem:[%s783 + $0x10] sm:$0xff] %v775
        %787 = vst [vmem:[%s783 + $0x18] sm:$0xff] %v704
        %788 = vst [vmem:[%s783 + $0x20] sm:$0xff] %v706
        %789 = vst [vmem:[%s783 + $0x28] sm:$0xff] %v780
        %s790 = scalar_lea.vmem %s289, 64
        %v791 = vld [vmem:[%s790] sm:$0xff]
        %v792 = vld [vmem:[%s790 + $0x8] sm:$0xff]
        %v793 = vld [vmem:[%s790 + $0x10] sm:$0xff]
        %v794 = vld [vmem:[%s790 + $0x18] sm:$0xff]
        %s795 = scalar_lea.vmem %s225, 864 [#allocation2]
        %v796 = vld [vmem:[%s795] sm:$0xff]
        %v797 = vld [vmem:[%s795 + $0x8] sm:$0xff]
        %v798 = vld [vmem:[%s795 + $0x10] sm:$0xff]
        %v799 = vld [vmem:[%s795 + $0x18] sm:$0xff]
        %v800 = vld [vmem:[%s795 + $0x20] sm:$0xff]
        %v801 = vld [vmem:[%s795 + $0x28] sm:$0xff]
        %v802 = vld [vmem:[%s795 + $0x30] sm:$0xff]
        %v803 = vld [vmem:[%s795 + $0x38] sm:$0xff]
        %v804 = vld [vmem:[%s795 + $0x40] sm:$0xff]
        %v805 = vld [vmem:[%s795 + $0x48] sm:$0xff]
        %v806 = vld [vmem:[%s795 + $0x50] sm:$0xff]
        %v807 = vld [vmem:[%s795 + $0x58] sm:$0xff]
        %v808 = vld [vmem:[%s795 + $0x60] sm:$0xff]
        %v809 = vld [vmem:[%s795 + $0x68] sm:$0xff]
        %v810 = vld [vmem:[%s795 + $0x70] sm:$0xff]
        %v811 = vld [vmem:[%s795 + $0x78] sm:$0xff]
        %v812 = vld [vmem:[%s795 + $0x80] sm:$0xff]
        %v813 = vld [vmem:[%s795 + $0x88] sm:$0xff]
        %v814 = vld [vmem:[%s795 + $0x90] sm:$0xff]
        %v815 = vld [vmem:[%s795 + $0x98] sm:$0xff]
        %v816 = vld [vmem:[%s795 + $0xa0] sm:$0xff]
        %v817 = vld [vmem:[%s795 + $0xa8] sm:$0xff]
        %v818 = vld [vmem:[%s795 + $0xb0] sm:$0xff]
        %v819 = vld [vmem:[%s795 + $0xb8] sm:$0xff]
        %v820 = vld [vmem:[%s795 + $0xc0] sm:$0xff]
        %v821 = vld [vmem:[%s795 + $0xc8] sm:$0xff]
        %v822 = vld [vmem:[%s795 + $0xd0] sm:$0xff]
        %v823 = vld [vmem:[%s795 + $0xd8] sm:$0xff]
        %v824 = vld [vmem:[%s795 + $0xe0] sm:$0xff]
        %v825 = vld [vmem:[%s795 + $0xe8] sm:$0xff]
        %v826 = vld [vmem:[%s795 + $0xf0] sm:$0xff]
        %v827 = vld [vmem:[%s795 + $0xf8] sm:$0xff]
        %v828 = vld [vmem:[%s795 + $0x100] sm:$0xff]
        %v829 = vld [vmem:[%s795 + $0x108] sm:$0xff]
        %v830 = vld [vmem:[%s795 + $0x110] sm:$0xff]
        %v831 = vld [vmem:[%s795 + $0x118] sm:$0xff]
        %v832 = vld [vmem:[%s795 + $0x120] sm:$0xff]
        %v833 = vld [vmem:[%s795 + $0x128] sm:$0xff]
        %v834 = vld [vmem:[%s795 + $0x130] sm:$0xff]
        %v835 = vld [vmem:[%s795 + $0x138] sm:$0xff]
        %v836 = vld [vmem:[%s795 + $0x140] sm:$0xff]
        %v837 = vld [vmem:[%s795 + $0x148] sm:$0xff]
        %v838 = vld [vmem:[%s795 + $0x150] sm:$0xff]
        %v839 = vld [vmem:[%s795 + $0x158] sm:$0xff]
        %v840 = vld [vmem:[%s795 + $0x160] sm:$0xff]
        %v841 = vld [vmem:[%s795 + $0x168] sm:$0xff]
        %v842 = vld [vmem:[%s795 + $0x170] sm:$0xff]
        %v843 = vld [vmem:[%s795 + $0x178] sm:$0xff]
        %v844 = vld [vmem:[%s795 + $0x180] sm:$0xff]
        %v845 = vld [vmem:[%s795 + $0x188] sm:$0xff]
        %v846 = vld [vmem:[%s795 + $0x190] sm:$0xff]
        %v847 = vld [vmem:[%s795 + $0x198] sm:$0xff]
        %v848 = vld [vmem:[%s795 + $0x1a0] sm:$0xff]
        %v849 = vld [vmem:[%s795 + $0x1a8] sm:$0xff]
        %s850 = scalar_lea.vmem %s234, 6 [#allocation4]
        %v851 = vld [vmem:[%s850] sm:$0x7]
        %v853 = vlaneseq
        %v854 = vshrl.u32 %v853, 7
        %v855 = vsub.s32 0, %v854
        %v856 = vrot.slane %v851, %v855
        %v857 = vlaneseq
        %v858 = vshrl.u32 %v857, 7
        %v859 = vsub.s32 1, %v858
        %v860 = vrot.slane %v851, %v859
        %v861 = vlaneseq
        %v862 = vshrl.u32 %v861, 7
        %v863 = vsub.s32 2, %v862
        %v864 = vrot.slane %v851, %v863
        %v869 = vsel %vm382, %v792, 0
        %v872 = vsel %vm382, %v794, 0
        %874 = vmatprep.subr.mxu0 %v797
        %875 = vmatpush1.msra.mxu0 %v796
        %876 = vmatprep.subr.mxu0 %v800
        %877 = vmatpush1.msra.mxu0 %v799
        %878 = vmatprep.subr.mxu0 %v803
        %879 = vmatpush1.msra.mxu0 %v802
        %880 = vmatprep.subr.mxu0 %v806
        %881 = vmatpush1.msra.mxu0 %v805
        %882 = vmatprep.subr.mxu0 %v809
        %883 = vmatpush1.msra.mxu0 %v808
        %884 = vmatprep.subr.mxu0 %v812
        %885 = vmatpush1.msra.mxu0 %v811
        %886 = vmatprep.subr.mxu0 %v815
        %887 = vmatpush1.msra.mxu0 %v814
        %888 = vmatprep.subr.mxu0 %v818
        %889 = vmatpush1.msra.mxu0 %v817
        %890 = vmatprep.subr.mxu0 %v821
        %891 = vmatpush1.msra.mxu0 %v820
        %892 = vmatprep.subr.mxu0 %v824
        %893 = vmatpush1.msra.mxu0 %v823
        %894 = vmatprep.subr.mxu0 %v827
        %895 = vmatpush1.msra.mxu0 %v826
        %896 = vmatprep.subr.mxu0 %v830
        %897 = vmatpush1.msra.mxu0 %v829
        %898 = vmatprep.subr.mxu0 %v833
        %899 = vmatpush1.msra.mxu0 %v832
        %900 = vmatprep.subr.mxu0 %v836
        %901 = vmatpush1.msra.mxu0 %v835
        %902 = vmatprep.subr.mxu0 %v839
        %903 = vmatpush1.msra.mxu0 %v838
        %904 = vmatprep.subr.mxu0 %v842
        %905 = vmatpush1.msra.mxu0 %v841
        %906 = vmatprep.subr.mxu0 %v845
        %907 = vmatpush1.msra.mxu0 %v844
        %908 = vmatprep.subr.mxu0 %v848
        %909 = vmatpush1.msra.mxu0 %v847
        %910 = vmatprep.subr.mxu0 0.0
        %911 = vmatpush1.msra.mxu0 0.0
        %912 = vmatprep.subr.mxu0 0.0
        %913 = vmatpush1.msra.mxu0 0.0
        %914 = vmatprep.subr.mxu0 0.0
        %915 = vmatpush1.msra.mxu0 0.0
        %916 = vmatprep.subr.mxu0 0.0
        %917 = vmatpush1.msra.mxu0 0.0
        %918 = vmatprep.subr.mxu0 0.0
        %919 = vmatpush1.msra.mxu0 0.0
        %920 = vmatprep.subr.mxu0 0.0
        %921 = vmatpush1.msra.mxu0 0.0
        %922 = vmatprep.subr.mxu0 0.0
        %923 = vmatpush1.msra.mxu0 0.0
        %924 = vmatprep.subr.mxu0 0.0
        %925 = vmatpush1.msra.mxu0 0.0
        %926 = vmatprep.subr.mxu0 0.0
        %927 = vmatpush1.msra.mxu0 0.0
        %928 = vmatprep.subr.mxu0 0.0
        %929 = vmatpush1.msra.mxu0 0.0
        %930 = vmatprep.subr.mxu0 0.0
        %931 = vmatpush1.msra.mxu0 0.0
        %932 = vmatprep.subr.mxu0 0.0
        %933 = vmatpush1.msra.mxu0 0.0
        %934 = vmatprep.subr.mxu0 0.0
        %935 = vmatpush1.msra.mxu0 0.0
        %936 = vmatprep.subr.mxu0 0.0
        %937 = vmatpush1.msra.mxu0 0.0
        %938 = vmatprep.mubr.f32.mxu0 %v869
        %939 = vmatmul.mubr.f32.gmra.mrb[0].mxu0 %v791
        %v940 = vpop.f32.mrb[0].mxu0
        %v941 = vadd.f32 %v856, %v940
        %v942 = vpop.f32.mrb[0].mxu0
        %v943 = vadd.f32 %v860, %v942
        %944 = vmatprep.mubr.f32.mxu0 %v872
        %945 = vmatmul.mubr.f32.gmra.mrb[0].mxu0 %v793
        %v946 = vpop.f32.mrb[0].mxu0
        %v947 = vadd.f32 %v856, %v946
        %v948 = vpop.f32.mrb[0].mxu0
        %v949 = vadd.f32 %v860, %v948
        %950 = vdwg.mxu0
        %951 = vmatprep.subr.mxu0 0.0
        %952 = vmatpush1.msra.mxu0 %v798
        %953 = vmatprep.subr.mxu0 0.0
        %954 = vmatpush1.msra.mxu0 %v801
        %955 = vmatprep.subr.mxu0 0.0
        %956 = vmatpush1.msra.mxu0 %v804
        %957 = vmatprep.subr.mxu0 0.0
        %958 = vmatpush1.msra.mxu0 %v807
        %959 = vmatprep.subr.mxu0 0.0
        %960 = vmatpush1.msra.mxu0 %v810
        %961 = vmatprep.subr.mxu0 0.0
        %962 = vmatpush1.msra.mxu0 %v813
        %963 = vmatprep.subr.mxu0 0.0
        %964 = vmatpush1.msra.mxu0 %v816
        %965 = vmatprep.subr.mxu0 0.0
        %966 = vmatpush1.msra.mxu0 %v819
        %967 = vmatprep.subr.mxu0 0.0
        %968 = vmatpush1.msra.mxu0 %v822
        %969 = vmatprep.subr.mxu0 0.0
        %970 = vmatpush1.msra.mxu0 %v825
        %971 = vmatprep.subr.mxu0 0.0
        %972 = vmatpush1.msra.mxu0 %v828
        %973 = vmatprep.subr.mxu0 0.0
        %974 = vmatpush1.msra.mxu0 %v831
        %975 = vmatprep.subr.mxu0 0.0
        %976 = vmatpush1.msra.mxu0 %v834
        %977 = vmatprep.subr.mxu0 0.0
        %978 = vmatpush1.msra.mxu0 %v837
        %979 = vmatprep.subr.mxu0 0.0
        %980 = vmatpush1.msra.mxu0 %v840
        %981 = vmatprep.subr.mxu0 0.0
        %982 = vmatpush1.msra.mxu0 %v843
        %983 = vmatprep.subr.mxu0 0.0
        %984 = vmatpush1.msra.mxu0 %v846
        %985 = vmatprep.subr.mxu0 0.0
        %986 = vmatpush1.msra.mxu0 %v849
        %987 = vmatprep.subr.mxu0 0.0
        %988 = vmatpush1.msra.mxu0 0.0
        %989 = vmatprep.subr.mxu0 0.0
        %990 = vmatpush1.msra.mxu0 0.0
        %991 = vmatprep.subr.mxu0 0.0
        %992 = vmatpush1.msra.mxu0 0.0
        %993 = vmatprep.subr.mxu0 0.0
        %994 = vmatpush1.msra.mxu0 0.0
        %995 = vmatprep.subr.mxu0 0.0
        %996 = vmatpush1.msra.mxu0 0.0
        %997 = vmatprep.subr.mxu0 0.0
        %998 = vmatpush1.msra.mxu0 0.0
        %999 = vmatprep.subr.mxu0 0.0
        %1000 = vmatpush1.msra.mxu0 0.0
        %1001 = vmatprep.subr.mxu0 0.0
        %1002 = vmatpush1.msra.mxu0 0.0
        %1003 = vmatprep.subr.mxu0 0.0
        %1004 = vmatpush1.msra.mxu0 0.0
        %1005 = vmatprep.subr.mxu0 0.0
        %1006 = vmatpush1.msra.mxu0 0.0
        %1007 = vmatprep.subr.mxu0 0.0
        %1008 = vmatpush1.msra.mxu0 0.0
        %1009 = vmatprep.subr.mxu0 0.0
        %1010 = vmatpush1.msra.mxu0 0.0
        %1011 = vmatprep.subr.mxu0 0.0
        %1012 = vmatpush1.msra.mxu0 0.0
        %1013 = vmatprep.subr.mxu0 0.0
        %1014 = vmatpush1.msra.mxu0 0.0
        %1015 = vmatprep.mubr.f32.mxu0 %v869
        %1016 = vmatmul.mubr.f32.gmra.mrb[0].mxu0 %v791
        %v1017 = vpop.f32.mrb[0].mxu0
        %v1018 = vadd.f32 %v864, %v1017
        %v1019 = vpop.f32.mrb[0].mxu0
        %1020 = vmatprep.mubr.f32.mxu0 %v872
        %1021 = vmatmul.mubr.f32.gmra.mrb[0].mxu0 %v793
        %v1022 = vpop.f32.mrb[0].mxu0
        %v1023 = vadd.f32 %v864, %v1022
        %v1024 = vpop.f32.mrb[0].mxu0
        %1025 = vdwg.mxu0
        %s1026 = scalar_lea.vmem %s304, 96
        %1027 = vst [vmem:[%s1026] sm:$0xff] %v941
        %1028 = vst [vmem:[%s1026 + $0x8] sm:$0xff] %v943
        %1029 = vst [vmem:[%s1026 + $0x10] sm:$0xff] %v1018
        %1030 = vst [vmem:[%s1026 + $0x18] sm:$0xff] %v947
        %1031 = vst [vmem:[%s1026 + $0x20] sm:$0xff] %v949
        %1032 = vst [vmem:[%s1026 + $0x28] sm:$0xff] %v1023
        %s1033 = scalar_lea.vmem %s289, 96
        %v1034 = vld [vmem:[%s1033] sm:$0xff]
        %v1035 = vld [vmem:[%s1033 + $0x8] sm:$0xff]
        %v1036 = vld [vmem:[%s1033 + $0x10] sm:$0xff]
        %v1037 = vld [vmem:[%s1033 + $0x18] sm:$0xff]
        %s1038 = scalar_lea.vmem %s225, 1296 [#allocation2]
        %v1039 = vld [vmem:[%s1038] sm:$0xff]
        %v1040 = vld [vmem:[%s1038 + $0x8] sm:$0xff]
        %v1041 = vld [vmem:[%s1038 + $0x10] sm:$0xff]
        %v1042 = vld [vmem:[%s1038 + $0x18] sm:$0xff]
        %v1043 = vld [vmem:[%s1038 + $0x20] sm:$0xff]
        %v1044 = vld [vmem:[%s1038 + $0x28] sm:$0xff]
        %v1045 = vld [vmem:[%s1038 + $0x30] sm:$0xff]
        %v1046 = vld [vmem:[%s1038 + $0x38] sm:$0xff]
        %v1047 = vld [vmem:[%s1038 + $0x40] sm:$0xff]
        %v1048 = vld [vmem:[%s1038 + $0x48] sm:$0xff]
        %v1049 = vld [vmem:[%s1038 + $0x50] sm:$0xff]
        %v1050 = vld [vmem:[%s1038 + $0x58] sm:$0xff]
        %v1051 = vld [vmem:[%s1038 + $0x60] sm:$0xff]
        %v1052 = vld [vmem:[%s1038 + $0x68] sm:$0xff]
        %v1053 = vld [vmem:[%s1038 + $0x70] sm:$0xff]
        %v1054 = vld [vmem:[%s1038 + $0x78] sm:$0xff]
        %v1055 = vld [vmem:[%s1038 + $0x80] sm:$0xff]
        %v1056 = vld [vmem:[%s1038 + $0x88] sm:$0xff]
        %v1057 = vld [vmem:[%s1038 + $0x90] sm:$0xff]
        %v1058 = vld [vmem:[%s1038 + $0x98] sm:$0xff]
        %v1059 = vld [vmem:[%s1038 + $0xa0] sm:$0xff]
        %v1060 = vld [vmem:[%s1038 + $0xa8] sm:$0xff]
        %v1061 = vld [vmem:[%s1038 + $0xb0] sm:$0xff]
        %v1062 = vld [vmem:[%s1038 + $0xb8] sm:$0xff]
        %v1063 = vld [vmem:[%s1038 + $0xc0] sm:$0xff]
        %v1064 = vld [vmem:[%s1038 + $0xc8] sm:$0xff]
        %v1065 = vld [vmem:[%s1038 + $0xd0] sm:$0xff]
        %v1066 = vld [vmem:[%s1038 + $0xd8] sm:$0xff]
        %v1067 = vld [vmem:[%s1038 + $0xe0] sm:$0xff]
        %v1068 = vld [vmem:[%s1038 + $0xe8] sm:$0xff]
        %v1069 = vld [vmem:[%s1038 + $0xf0] sm:$0xff]
        %v1070 = vld [vmem:[%s1038 + $0xf8] sm:$0xff]
        %v1071 = vld [vmem:[%s1038 + $0x100] sm:$0xff]
        %v1072 = vld [vmem:[%s1038 + $0x108] sm:$0xff]
        %v1073 = vld [vmem:[%s1038 + $0x110] sm:$0xff]
        %v1074 = vld [vmem:[%s1038 + $0x118] sm:$0xff]
        %v1075 = vld [vmem:[%s1038 + $0x120] sm:$0xff]
        %v1076 = vld [vmem:[%s1038 + $0x128] sm:$0xff]
        %v1077 = vld [vmem:[%s1038 + $0x130] sm:$0xff]
        %v1078 = vld [vmem:[%s1038 + $0x138] sm:$0xff]
        %v1079 = vld [vmem:[%s1038 + $0x140] sm:$0xff]
        %v1080 = vld [vmem:[%s1038 + $0x148] sm:$0xff]
        %v1081 = vld [vmem:[%s1038 + $0x150] sm:$0xff]
        %v1082 = vld [vmem:[%s1038 + $0x158] sm:$0xff]
        %v1083 = vld [vmem:[%s1038 + $0x160] sm:$0xff]
        %v1084 = vld [vmem:[%s1038 + $0x168] sm:$0xff]
        %v1085 = vld [vmem:[%s1038 + $0x170] sm:$0xff]
        %v1086 = vld [vmem:[%s1038 + $0x178] sm:$0xff]
        %v1087 = vld [vmem:[%s1038 + $0x180] sm:$0xff]
        %v1088 = vld [vmem:[%s1038 + $0x188] sm:$0xff]
        %v1089 = vld [vmem:[%s1038 + $0x190] sm:$0xff]
        %v1090 = vld [vmem:[%s1038 + $0x198] sm:$0xff]
        %v1091 = vld [vmem:[%s1038 + $0x1a0] sm:$0xff]
        %v1092 = vld [vmem:[%s1038 + $0x1a8] sm:$0xff]
        %s1093 = scalar_lea.vmem %s234, 9 [#allocation4]
        %v1094 = vld [vmem:[%s1093] sm:$0x7]
        %v1096 = vlaneseq
        %v1097 = vshrl.u32 %v1096, 7
        %v1098 = vsub.s32 0, %v1097
        %v1099 = vrot.slane %v1094, %v1098
        %v1100 = vlaneseq
        %v1101 = vshrl.u32 %v1100, 7
        %v1102 = vsub.s32 1, %v1101
        %v1103 = vrot.slane %v1094, %v1102
        %v1104 = vlaneseq
        %v1105 = vshrl.u32 %v1104, 7
        %v1106 = vsub.s32 2, %v1105
        %v1107 = vrot.slane %v1094, %v1106
        %v1112 = vsel %vm382, %v1035, 0
        %v1115 = vsel %vm382, %v1037, 0
        %1117 = vmatprep.subr.mxu0 %v1040
        %1118 = vmatpush1.msra.mxu0 %v1039
        %1119 = vmatprep.subr.mxu0 %v1043
        %1120 = vmatpush1.msra.mxu0 %v1042
        %1121 = vmatprep.subr.mxu0 %v1046
        %1122 = vmatpush1.msra.mxu0 %v1045
        %1123 = vmatprep.subr.mxu0 %v1049
        %1124 = vmatpush1.msra.mxu0 %v1048
        %1125 = vmatprep.subr.mxu0 %v1052
        %1126 = vmatpush1.msra.mxu0 %v1051
        %1127 = vmatprep.subr.mxu0 %v1055
        %1128 = vmatpush1.msra.mxu0 %v1054
        %1129 = vmatprep.subr.mxu0 %v1058
        %1130 = vmatpush1.msra.mxu0 %v1057
        %1131 = vmatprep.subr.mxu0 %v1061
        %1132 = vmatpush1.msra.mxu0 %v1060
        %1133 = vmatprep.subr.mxu0 %v1064
        %1134 = vmatpush1.msra.mxu0 %v1063
        %1135 = vmatprep.subr.mxu0 %v1067
        %1136 = vmatpush1.msra.mxu0 %v1066
        %1137 = vmatprep.subr.mxu0 %v1070
        %1138 = vmatpush1.msra.mxu0 %v1069
        %1139 = vmatprep.subr.mxu0 %v1073
        %1140 = vmatpush1.msra.mxu0 %v1072
        %1141 = vmatprep.subr.mxu0 %v1076
        %1142 = vmatpush1.msra.mxu0 %v1075
        %1143 = vmatprep.subr.mxu0 %v1079
        %1144 = vmatpush1.msra.mxu0 %v1078
        %1145 = vmatprep.subr.mxu0 %v1082
        %1146 = vmatpush1.msra.mxu0 %v1081
        %1147 = vmatprep.subr.mxu0 %v1085
        %1148 = vmatpush1.msra.mxu0 %v1084
        %1149 = vmatprep.subr.mxu0 %v1088
        %1150 = vmatpush1.msra.mxu0 %v1087
        %1151 = vmatprep.subr.mxu0 %v1091
        %1152 = vmatpush1.msra.mxu0 %v1090
        %1153 = vmatprep.subr.mxu0 0.0
        %1154 = vmatpush1.msra.mxu0 0.0
        %1155 = vmatprep.subr.mxu0 0.0
        %1156 = vmatpush1.msra.mxu0 0.0
        %1157 = vmatprep.subr.mxu0 0.0
        %1158 = vmatpush1.msra.mxu0 0.0
        %1159 = vmatprep.subr.mxu0 0.0
        %1160 = vmatpush1.msra.mxu0 0.0
        %1161 = vmatprep.subr.mxu0 0.0
        %1162 = vmatpush1.msra.mxu0 0.0
        %1163 = vmatprep.subr.mxu0 0.0
        %1164 = vmatpush1.msra.mxu0 0.0
        %1165 = vmatprep.subr.mxu0 0.0
        %1166 = vmatpush1.msra.mxu0 0.0
        %1167 = vmatprep.subr.mxu0 0.0
        %1168 = vmatpush1.msra.mxu0 0.0
        %1169 = vmatprep.subr.mxu0 0.0
        %1170 = vmatpush1.msra.mxu0 0.0
        %1171 = vmatprep.subr.mxu0 0.0
        %1172 = vmatpush1.msra.mxu0 0.0
        %1173 = vmatprep.subr.mxu0 0.0
        %1174 = vmatpush1.msra.mxu0 0.0
        %1175 = vmatprep.subr.mxu0 0.0
        %1176 = vmatpush1.msra.mxu0 0.0
        %1177 = vmatprep.subr.mxu0 0.0
        %1178 = vmatpush1.msra.mxu0 0.0
        %1179 = vmatprep.subr.mxu0 0.0
        %1180 = vmatpush1.msra.mxu0 0.0
        %1181 = vmatprep.mubr.f32.mxu0 %v1112
        %1182 = vmatmul.mubr.f32.gmra.mrb[0].mxu0 %v1034
        %v1183 = vpop.f32.mrb[0].mxu0
        %v1184 = vadd.f32 %v1099, %v1183
        %v1185 = vpop.f32.mrb[0].mxu0
        %v1186 = vadd.f32 %v1103, %v1185
        %1187 = vmatprep.mubr.f32.mxu0 %v1115
        %1188 = vmatmul.mubr.f32.gmra.mrb[0].mxu0 %v1036
        %v1189 = vpop.f32.mrb[0].mxu0
        %v1190 = vadd.f32 %v1099, %v1189
        %v1191 = vpop.f32.mrb[0].mxu0
        %v1192 = vadd.f32 %v1103, %v1191
        %1193 = vdwg.mxu0
        %1194 = vmatprep.subr.mxu0 0.0
        %1195 = vmatpush1.msra.mxu0 %v1041
        %1196 = vmatprep.subr.mxu0 0.0
        %1197 = vmatpush1.msra.mxu0 %v1044
        %1198 = vmatprep.subr.mxu0 0.0
        %1199 = vmatpush1.msra.mxu0 %v1047
        %1200 = vmatprep.subr.mxu0 0.0
        %1201 = vmatpush1.msra.mxu0 %v1050
        %1202 = vmatprep.subr.mxu0 0.0
        %1203 = vmatpush1.msra.mxu0 %v1053
        %1204 = vmatprep.subr.mxu0 0.0
        %1205 = vmatpush1.msra.mxu0 %v1056
        %1206 = vmatprep.subr.mxu0 0.0
        %1207 = vmatpush1.msra.mxu0 %v1059
        %1208 = vmatprep.subr.mxu0 0.0
        %1209 = vmatpush1.msra.mxu0 %v1062
        %1210 = vmatprep.subr.mxu0 0.0
        %1211 = vmatpush1.msra.mxu0 %v1065
        %1212 = vmatprep.subr.mxu0 0.0
        %1213 = vmatpush1.msra.mxu0 %v1068
        %1214 = vmatprep.subr.mxu0 0.0
        %1215 = vmatpush1.msra.mxu0 %v1071
        %1216 = vmatprep.subr.mxu0 0.0
        %1217 = vmatpush1.msra.mxu0 %v1074
        %1218 = vmatprep.subr.mxu0 0.0
        %1219 = vmatpush1.msra.mxu0 %v1077
        %1220 = vmatprep.subr.mxu0 0.0
        %1221 = vmatpush1.msra.mxu0 %v1080
        %1222 = vmatprep.subr.mxu0 0.0
        %1223 = vmatpush1.msra.mxu0 %v1083
        %1224 = vmatprep.subr.mxu0 0.0
        %1225 = vmatpush1.msra.mxu0 %v1086
        %1226 = vmatprep.subr.mxu0 0.0
        %1227 = vmatpush1.msra.mxu0 %v1089
        %1228 = vmatprep.subr.mxu0 0.0
        %1229 = vmatpush1.msra.mxu0 %v1092
        %1230 = vmatprep.subr.mxu0 0.0
        %1231 = vmatpush1.msra.mxu0 0.0
        %1232 = vmatprep.subr.mxu0 0.0
        %1233 = vmatpush1.msra.mxu0 0.0
        %1234 = vmatprep.subr.mxu0 0.0
        %1235 = vmatpush1.msra.mxu0 0.0
        %1236 = vmatprep.subr.mxu0 0.0
        %1237 = vmatpush1.msra.mxu0 0.0
        %1238 = vmatprep.subr.mxu0 0.0
        %1239 = vmatpush1.msra.mxu0 0.0
        %1240 = vmatprep.subr.mxu0 0.0
        %1241 = vmatpush1.msra.mxu0 0.0
        %1242 = vmatprep.subr.mxu0 0.0
        %1243 = vmatpush1.msra.mxu0 0.0
        %1244 = vmatprep.subr.mxu0 0.0
        %1245 = vmatpush1.msra.mxu0 0.0
        %1246 = vmatprep.subr.mxu0 0.0
        %1247 = vmatpush1.msra.mxu0 0.0
        %1248 = vmatprep.subr.mxu0 0.0
        %1249 = vmatpush1.msra.mxu0 0.0
        %1250 = vmatprep.subr.mxu0 0.0
        %1251 = vmatpush1.msra.mxu0 0.0
        %1252 = vmatprep.subr.mxu0 0.0
        %1253 = vmatpush1.msra.mxu0 0.0
        %1254 = vmatprep.subr.mxu0 0.0
        %1255 = vmatpush1.msra.mxu0 0.0
        %1256 = vmatprep.subr.mxu0 0.0
        %1257 = vmatpush1.msra.mxu0 0.0
        %1258 = vmatprep.mubr.f32.mxu0 %v1112
        %1259 = vmatmul.mubr.f32.gmra.mrb[0].mxu0 %v1034
        %v1260 = vpop.f32.mrb[0].mxu0
        %v1261 = vadd.f32 %v1107, %v1260
        %v1262 = vpop.f32.mrb[0].mxu0
        %1263 = vmatprep.mubr.f32.mxu0 %v1115
        %1264 = vmatmul.mubr.f32.gmra.mrb[0].mxu0 %v1036
        %v1265 = vpop.f32.mrb[0].mxu0
        %v1266 = vadd.f32 %v1107, %v1265
        %v1267 = vpop.f32.mrb[0].mxu0
        %1268 = vdwg.mxu0
        %s1269 = scalar_lea.vmem %s304, 144
        %1270 = vst [vmem:[%s1269] sm:$0xff] %v1184
        %1271 = vst [vmem:[%s1269 + $0x8] sm:$0xff] %v1186
        %1272 = vst [vmem:[%s1269 + $0x10] sm:$0xff] %v1261
        %1273 = vst [vmem:[%s1269 + $0x18] sm:$0xff] %v1190
        %1274 = vst [vmem:[%s1269 + $0x20] sm:$0xff] %v1192
        %1275 = vst [vmem:[%s1269 + $0x28] sm:$0xff] %v1266
        %s1276 = smul.u32 4, %s24
        %s1277 = smul.u32 2, %s25
        %p1278 = scmp.lt.s32.totalorder %s1276, 15
        %s1279 = scalar_select %p1278, %s1276, 15
        %p1280 = scmp.lt.s32.totalorder %s1277, 1
        %s1281 = scalar_select %p1280, %s1277, 1
        %s1282 = smul.addr %s1281, 3
        %s1283 = smul.addr %s1279, 6
        %s1284 = sadd.s32 %s1282, %s1283
        %s1285 = smul.addr %s1284, 8
        %s1286 = scalar_lea.vmem %s3, %s1285
        // Predicated region
        $region41: #{separate_linear.1} parent=31 // pred_check
          %p1287 = pneg %p132
        $region42: #{separate_linear.1} parent=31 // pred_check_branch
          %1289 = sbr.rel (%p1287) target = $region44
        $region43: #{separate_linear.1} parent=31 // pred_region
          %s1290 = smul.u32 4, %s24
          %s1291 = smul.u32 2, %s25
        $region44: #{separate_linear.1} parent=31 // pred_fallthru
          _
      $region32: #{separate_linear.1} parent=5 // pred_fallthru
        _
      %p1292 = scmp.le.s32.totalorder 2, %s15
      // Predicated region
      $region45: #{separate_linear.1} parent=5 // pred_check
        %p1293 = pneg %p1292
      $region46: #{separate_linear.1} parent=5 // pred_check_branch
        %1295 = sbr.rel (%p1293) target = $region48
      $region47: #{separate_linear.1} parent=5 // pred_region
        %s1296 = ssub.s32 %s15, 2
        // Predicated region
        $region49: #{separate_linear.1} parent=47 // pred_check
          %p1297 = pneg %p138
        $region50: #{separate_linear.1} parent=47 // pred_check_branch
          %1299 = sbr.rel (%p1297) target = $region52
        $region51: #{separate_linear.1} parent=47 // pred_region
          %s1300 = smul.u32 4, %s26
          %s1301 = smul.u32 2, %s27
          %p1302 = scmp.lt.s32.totalorder %s1300, 15
          %s1303 = scalar_select %p1302, %s1300, 15
          %p1304 = scmp.lt.s32.totalorder %s1301, 1
          %s1305 = scalar_select %p1304, %s1301, 1
          %s1306 = smul.addr %s1305, 3
          %s1307 = smul.addr %s1303, 6
          %s1308 = sadd.s32 %s1306, %s1307
          %s1309 = smul.addr %s1308, 8
          %s1310 = scalar_lea.vmem %s3, %s1309
        $region52: #{separate_linear.1} parent=47 // pred_fallthru
          _
      $region48: #{separate_linear.1} parent=5 // pred_fallthru
        _
    $region6: #{separate_linear.1} parent=1 // loop_footer
      %s19 = sadd.s32 1, %s15
    $region7: #{separate_linear.1} parent=1 // loop_footer_branch
      %14 = sbr.rel target = $region3
    $region8: #{separate_linear.1} parent=1 // loop_exit
      _
    %1311 = vsyncpa [#allocation3], 1
    %s1312 = scalar_lea.sflag [#allocation3], 1
    %1313 = vsyncpa %s1312, 1
    %1314 = vsyncpa [#allocation5], 1
    %s1315 = scalar_lea.sflag [#allocation5], 1
    %1316 = vsyncpa %s1315, 1

</llo_original>
